<compile_context>
chip_gen: v7x
topology: tpu7x:2x2x1
jax: 0.10.0
libtpu: 0.0.40
codegen_flags: <defaults>
</compile_context>

<pallas_src>
import jax
import jax.numpy as jnp
from jax.experimental import pallas as pl
from jax.experimental.pallas import tpu as pltpu

NEG_SLOPE = 0.01                  # nn.LeakyReLU default
_VMEM_LIMIT = 48 * 1024 * 1024    # explicit scoped-VMEM budget (headroom on v7x)


def _lrelu(v):
    return jnp.where(v > 0, v, NEG_SLOPE * v)


def _round_up(x, m):
    return ((x + m - 1) // m) * m


def _zero_pad(a, shape):
    out = jnp.zeros(shape, a.dtype)
    return out.at[tuple(slice(0, s) for s in a.shape)].set(a)


# --------------------------------------------------------------------------
# Kernels
# --------------------------------------------------------------------------
def _embed_kernel(xin_ref, wemb_ref, bemb_ref, wi_ref, bi_ref, x_ref, xb_ref):
    # Fused modality MLPs (block-diagonal weight, packed outputs) + input proj.
    h = _lrelu(jnp.dot(xin_ref[...], wemb_ref[...],
                       preferred_element_type=jnp.float32) + bemb_ref[...])
    x = _lrelu(jnp.dot(h, wi_ref[...],
                       preferred_element_type=jnp.float32) + bi_ref[...])
    x_ref[...] = x
    xb_ref[...] = x.astype(jnp.bfloat16)


def _rgcn_body(adj_ref, xb_ref, xrow_ref, w_ref, b_ref):
    # Aggregate-first relational conv on one dst tile:
    #   out = x_dst @ W_root + (A0 @ x) @ W_rel0 + (A1 @ x) @ W_rel1 + b
    xb = xb_ref[...]                                                    # (Np, Hp) bf16, resident
    y0 = jnp.dot(adj_ref[0], xb, preferred_element_type=jnp.float32)   # (tm, Hp)
    y1 = jnp.dot(adj_ref[1], xb, preferred_element_type=jnp.float32)   # (tm, Hp)
    out = jnp.dot(xrow_ref[...], w_ref[0],
                  preferred_element_type=jnp.float32) + b_ref[...]
    out = out + jnp.dot(y0, w_ref[1], preferred_element_type=jnp.float32)
    out = out + jnp.dot(y1, w_ref[2], preferred_element_type=jnp.float32)
    return out


def _rgcn_kernel(adj_ref, xb_ref, xrow_ref, w_ref, b_ref, out_ref, outb_ref):
    out = _rgcn_body(adj_ref, xb_ref, xrow_ref, w_ref, b_ref)
    out_ref[...] = out
    outb_ref[...] = out.astype(jnp.bfloat16)


def _rgcn_head_kernel(adj_ref, xb_ref, xrow_ref, w_ref, b_ref,
                      wo1_ref, bo1_ref, wo2_ref, bo2_ref, out_ref):
    h = _rgcn_body(adj_ref, xb_ref, xrow_ref, w_ref, b_ref)
    h = _lrelu(jnp.dot(h, wo1_ref[...],
                       preferred_element_type=jnp.float32) + bo1_ref[...])
    out_ref[...] = jnp.dot(h, wo2_ref[...],
                           preferred_element_type=jnp.float32) + bo2_ref[...]


# --------------------------------------------------------------------------
# Parameter packing: natural [in, out] weights -> padded / fused tensors
# --------------------------------------------------------------------------
def pack_params(params, *, hidden_dim, des_size, tweet_size,
                num_prop_size, cat_prop_size):
    f32 = jnp.float32
    h4 = hidden_dim // 4
    hp = _round_up(hidden_dim, 128)   # padded hidden (also padded logit width)
    dp = _round_up(des_size, 128)
    tp = _round_up(tweet_size, 128)
    npf = _round_up(num_prop_size, 128)
    cpf = _round_up(cat_prop_size, 128)
    fin = dp + tp + npf + cpf

    # Block-diagonal fused modality weight; outputs packed contiguously so the
    # result already IS the concat(d,t,n,c) layout of the PyTorch model.
    w_emb = jnp.zeros((fin, hp), f32)
    w_emb = w_emb.at[0:des_size, 0:h4].set(params["wd"])
    w_emb = w_emb.at[dp:dp + tweet_size, h4:2 * h4].set(params["wt"])
    w_emb = w_emb.at[dp + tp:dp + tp + num_prop_size,
                     2 * h4:3 * h4].set(params["wn"])
    w_emb = w_emb.at[dp + tp + npf:dp + tp + npf + cat_prop_size,
                     3 * h4:4 * h4].set(params["wc"])
    b_emb = jnp.zeros((1, hp), f32)
    for m, key in enumerate(("bd", "bt", "bn", "bc")):
        b_emb = b_emb.at[:, m * h4:(m + 1) * h4].set(params[key])

    wi = _zero_pad(params["wi"], (hp, hp))
    bi = _zero_pad(params["bi"], (1, hp))

    def stack_rgcn(root, rel, brg):
        w = jnp.zeros((3, hp, hp), f32)
        w = w.at[0, 0:hidden_dim, 0:hidden_dim].set(root)
        w = w.at[1, 0:hidden_dim, 0:hidden_dim].set(rel[0])
        w = w.at[2, 0:hidden_dim, 0:hidden_dim].set(rel[1])
        return w, _zero_pad(brg, (1, hp))

    w1, b1 = stack_rgcn(params["root1"], params["rel1"], params["brg1"])
    w2, b2 = stack_rgcn(params["root2"], params["rel2"], params["brg2"])

    packed = dict(
        w_emb=w_emb, b_emb=b_emb, wi=wi, bi=bi, w1=w1, b1=b1, w2=w2, b2=b2,
        wo1=_zero_pad(params["wo1"], (hp, hp)),
        bo1=_zero_pad(params["bo1"], (1, hp)),
        wo2=_zero_pad(params["wo2"], (hp, 128)),
        bo2=_zero_pad(params["bo2"], (1, 128)),
    )
    dims = dict(h4=h4, hp=hp, dp=dp, tp=tp, npf=npf, cpf=cpf, fin=fin)
    return packed, dims


# --------------------------------------------------------------------------
# Forward wrapper
# --------------------------------------------------------------------------
def botrgcn_forward(des, tweet, num_prop, cat_prop, edge_index, edge_type, params,
                    *, hidden_dim, num_relations=2, node_tile=None):
    assert num_relations == 2, "kernel is specialized for num_relations=2"
    f32 = jnp.float32
    bf16 = jnp.bfloat16
    n_nodes = des.shape[0]

    packed, dims = pack_params(
        params, hidden_dim=hidden_dim,
        des_size=des.shape[1], tweet_size=tweet.shape[1],
        num_prop_size=num_prop.shape[1], cat_prop_size=cat_prop.shape[1])
    hp, fin = dims["hp"], dims["fin"]
    out_pad = 128

    # --- node tiling (dst dimension); multiple of 16 for bf16 sublane packing ---
    if node_tile is None:
        tm = min(512, _round_up(n_nodes, 16))
    else:
        tm = _round_up(node_tile, 16)
    np_nodes = _round_up(n_nodes, tm)
    grid = (np_nodes // tm,)

    # --- padded & fused node features [des | tweet | num | cat] ---
    xin = jnp.concatenate([
        _zero_pad(des.astype(f32), (np_nodes, dims["dp"])),
        _zero_pad(tweet.astype(f32), (np_nodes, dims["tp"])),
        _zero_pad(num_prop.astype(f32), (np_nodes, dims["npf"])),
        _zero_pad(cat_prop.astype(f32), (np_nodes, dims["cpf"])),
    ], axis=1)

    # --- per-relation row-normalized dense adjacency (mean aggr), bf16 ---
    adj = jnp.zeros((num_relations, np_nodes, np_nodes), f32)
    adj = adj.at[edge_type, edge_index[1], edge_index[0]].add(1.0)
    deg = adj.sum(axis=2, keepdims=True)
    adj = (adj / jnp.maximum(deg, 1.0)).astype(bf16)

    cparams = pltpu.CompilerParams(
        dimension_semantics=("parallel",),
        vmem_limit_bytes=_VMEM_LIMIT)

    def full(shape):
        nd = len(shape)
        return pl.BlockSpec(shape, lambda i: (0,) * nd)

    def rows(shape):
        nd = len(shape)
        return pl.BlockSpec(shape, lambda i: (i,) + (0,) * (nd - 1))

    # ---- stage 1: fused modality MLPs + input projection (node-tiled) ----
    x, xb = pl.pallas_call(
        _embed_kernel,
        out_shape=(jax.ShapeDtypeStruct((np_nodes, hp), f32),
                   jax.ShapeDtypeStruct((np_nodes, hp), bf16)),
        grid=grid,
        in_specs=[rows((tm, fin)), full((fin, hp)), full((1, hp)),
                  full((hp, hp)), full((1, hp))],
        out_specs=(rows((tm, hp)), rows((tm, hp))),
        compiler_params=cparams,
    )(xin, packed["w_emb"], packed["b_emb"], packed["wi"], packed["bi"])

    adj_spec = pl.BlockSpec((num_relations, tm, np_nodes), lambda i: (0, i, 0))

    # ---- stage 2: RGCN layer 1 (dst-tiled, adjacency streamed) ----
    x2, x2b = pl.pallas_call(
        _rgcn_kernel,
        out_shape=(jax.ShapeDtypeStruct((np_nodes, hp), f32),
                   jax.ShapeDtypeStruct((np_nodes, hp), bf16)),
        grid=grid,
        in_specs=[adj_spec, full((np_nodes, hp)), rows((tm, hp)),
                  full((3, hp, hp)), full((1, hp))],
        out_specs=(rows((tm, hp)), rows((tm, hp))),
        compiler_params=cparams,
    )(adj, xb, x, packed["w1"], packed["b1"])

    # ---- stage 3: RGCN layer 2 fused with output MLP head ----
    logits = pl.pallas_call(
        _rgcn_head_kernel,
        out_shape=jax.ShapeDtypeStruct((np_nodes, out_pad), f32),
        grid=grid,
        in_specs=[adj_spec, full((np_nodes, hp)), rows((tm, hp)),
                  full((3, hp, hp)), full((1, hp)),
                  full((hp, hp)), full((1, hp)),
                  full((hp, out_pad)), full((1, out_pad))],
        out_specs=rows((tm, out_pad)),
        compiler_params=cparams,
    )(adj, x2b, x2, packed["w2"], packed["b2"],
      packed["wo1"], packed["bo1"], packed["wo2"], packed["bo2"])

    return logits[:n_nodes, :2]


# --------------------------------------------------------------------------
# Parameter init (natural PyTorch-like shapes; weights stored [in, out])
# --------------------------------------------------------------------------
def init_params(key, hidden_dim, des_size=768, tweet_size=768,
                num_prop_size=5, cat_prop_size=3, num_relations=2):
    h4 = hidden_dim // 4
    keys = jax.random.split(key, 32)
    k = iter(keys)

    def w(shape):
        return (0.05 * jax.random.normal(next(k), shape)).astype(jnp.float32)

    def b(dim):
        return (0.05 * jax.random.normal(next(k), (1, dim))).astype(jnp.float32)

    return {
        "wd": w((des_size, h4)), "bd": b(h4),
        "wt": w((tweet_size, h4)), "bt": b(h4),
        "wn": w((num_prop_size, h4)), "bn": b(h4),
        "wc": w((cat_prop_size, h4)), "bc": b(h4),
        "wi": w((hidden_dim, hidden_dim)), "bi": b(hidden_dim),
        "root1": w((hidden_dim, hidden_dim)),
        "rel1": w((num_relations, hidden_dim, hidden_dim)),
        "brg1": b(hidden_dim),
        "root2": w((hidden_dim, hidden_dim)),
        "rel2": w((num_relations, hidden_dim, hidden_dim)),
        "brg2": b(hidden_dim),
        "wo1": w((hidden_dim, hidden_dim)), "bo1": b(hidden_dim),
        "wo2": w((hidden_dim, 2)), "bo2": b(2),
    }


if __name__ == "__main__":
    N_NODES = 256
    HIDDEN = 32
    DES, TWEET, NUMP, CATP = 768, 768, 5, 3
    N_EDGES = 1024
    N_REL = 2

    key = jax.random.PRNGKey(0)
    k_des, k_tw, k_np, k_cp, k_ei, k_et, k_par = jax.random.split(key, 7)

    des = jax.random.normal(k_des, (N_NODES, DES), jnp.float32)
    tweet = jax.random.normal(k_tw, (N_NODES, TWEET), jnp.float32)
    num_prop = jax.random.normal(k_np, (N_NODES, NUMP), jnp.float32)
    cat_prop = jax.random.normal(k_cp, (N_NODES, CATP), jnp.float32)
    edge_index = jax.random.randint(k_ei, (2, N_EDGES), 0, N_NODES, jnp.int32)
    edge_type = jax.random.randint(k_et, (N_EDGES,), 0, N_REL, jnp.int32)

    params = init_params(k_par, HIDDEN, DES, TWEET, NUMP, CATP, N_REL)

    out = botrgcn_forward(des, tweet, num_prop, cat_prop, edge_index, edge_type,
                          params, hidden_dim=HIDDEN, num_relations=N_REL,
                          node_tile=128)
    jax.block_until_ready(out)
    assert out.shape == (N_NODES, 2)
    print("KERNEL_OK")
</pallas_src>

<mosaic_0001>
module attributes {stable_mosaic.version = 11 : i64} {
  func.func @_embed_kernel(%arg0: i32, %arg1: memref<128x1792xf32, #tpu.memory_space<vmem>>, %arg2: memref<1792x128xf32, #tpu.memory_space<vmem>>, %arg3: memref<1x128xf32, #tpu.memory_space<vmem>>, %arg4: memref<128x128xf32, #tpu.memory_space<vmem>>, %arg5: memref<1x128xf32, #tpu.memory_space<vmem>>, %arg6: memref<128x128xf32, #tpu.memory_space<vmem>>, %arg7: memref<128x128xbf16, #tpu.memory_space<vmem>>) attributes {dimension_semantics = [#tpu.dimension_semantics<parallel>], iteration_bounds = array<i64: 2>, scalar_prefetch = 0 : i64, scratch_operands = 0 : i64, tpu.core_type = #tpu.core_type<tc>, window_params = [{transform_indices = @transform_0, window_bounds = array<i64: 128, 1792>}, {pipeline_mode = #tpu.pipeline_mode<synchronous>, transform_indices = @transform_1, window_bounds = array<i64: 1792, 128>}, {pipeline_mode = #tpu.pipeline_mode<synchronous>, transform_indices = @transform_2, window_bounds = array<i64: 1, 128>}, {pipeline_mode = #tpu.pipeline_mode<synchronous>, transform_indices = @transform_3, window_bounds = array<i64: 128, 128>}, {pipeline_mode = #tpu.pipeline_mode<synchronous>, transform_indices = @transform_4, window_bounds = array<i64: 1, 128>}, {transform_indices = @transform_5, window_bounds = array<i64: 128, 128>}, {transform_indices = @transform_6, window_bounds = array<i64: 128, 128>}]} {
    %c0 = arith.constant 0 : index
    %c0_0 = arith.constant 0 : index
    %0 = vector.load %arg1[%c0, %c0_0] : memref<128x1792xf32, #tpu.memory_space<vmem>>, vector<128x1792xf32>
    %c0_1 = arith.constant 0 : index
    %c0_2 = arith.constant 0 : index
    %1 = vector.load %arg2[%c0_1, %c0_2] : memref<1792x128xf32, #tpu.memory_space<vmem>>, vector<1792x128xf32>
    %cst = arith.constant dense<0.000000e+00> : vector<128x128xf32>
    %2 = tpu.matmul %0, %1, %cst {dimension_numbers = #tpu.dot_dimension_numbers<[1], [0], [0], [1], [0, 0, 1, 1], [], []>} : vector<128x1792xf32>, vector<1792x128xf32>, vector<128x128xf32> -> vector<128x128xf32>
    %c0_3 = arith.constant 0 : index
    %c0_4 = arith.constant 0 : index
    %3 = vector.load %arg3[%c0_3, %c0_4] : memref<1x128xf32, #tpu.memory_space<vmem>>, vector<1x128xf32>
    %4 = vector.broadcast %3 : vector<1x128xf32> to vector<128x128xf32>
    %5 = arith.addf %2, %4 : vector<128x128xf32>
    %cst_5 = arith.constant 0.000000e+00 : f32
    %6 = vector.broadcast %cst_5 : f32 to vector<128x128xf32>
    %7 = arith.cmpf ogt, %5, %6 : vector<128x128xf32>
    %cst_6 = arith.constant 0.00999999977 : f32
    %8 = vector.broadcast %cst_6 : f32 to vector<128x128xf32>
    %9 = arith.mulf %8, %5 : vector<128x128xf32>
    %10 = arith.select %7, %5, %9 : vector<128x128xi1>, vector<128x128xf32>
    %c0_7 = arith.constant 0 : index
    %c0_8 = arith.constant 0 : index
    %11 = vector.load %arg4[%c0_7, %c0_8] : memref<128x128xf32, #tpu.memory_space<vmem>>, vector<128x128xf32>
    %cst_9 = arith.constant dense<0.000000e+00> : vector<128x128xf32>
    %12 = tpu.matmul %10, %11, %cst_9 {dimension_numbers = #tpu.dot_dimension_numbers<[1], [0], [0], [1], [0, 0, 1, 1], [], []>} : vector<128x128xf32>, vector<128x128xf32>, vector<128x128xf32> -> vector<128x128xf32>
    %c0_10 = arith.constant 0 : index
    %c0_11 = arith.constant 0 : index
    %13 = vector.load %arg5[%c0_10, %c0_11] : memref<1x128xf32, #tpu.memory_space<vmem>>, vector<1x128xf32>
    %14 = vector.broadcast %13 : vector<1x128xf32> to vector<128x128xf32>
    %15 = arith.addf %12, %14 : vector<128x128xf32>
    %cst_12 = arith.constant 0.000000e+00 : f32
    %16 = vector.broadcast %cst_12 : f32 to vector<128x128xf32>
    %17 = arith.cmpf ogt, %15, %16 : vector<128x128xf32>
    %cst_13 = arith.constant 0.00999999977 : f32
    %18 = vector.broadcast %cst_13 : f32 to vector<128x128xf32>
    %19 = arith.mulf %18, %15 : vector<128x128xf32>
    %20 = arith.select %17, %15, %19 : vector<128x128xi1>, vector<128x128xf32>
    %c0_14 = arith.constant 0 : index
    %c0_15 = arith.constant 0 : index
    %21 = vector.load %arg6[%c0_14, %c0_15] : memref<128x128xf32, #tpu.memory_space<vmem>>, vector<128x128xf32>
    tpu.vector_store %arg6[%c0_14, %c0_15], %20 {strides = array<i32>} : memref<128x128xf32, #tpu.memory_space<vmem>>, vector<128x128xf32>,
    %22 = arith.truncf %20 : vector<128x128xf32> to vector<128x128xbf16>
    %c0_16 = arith.constant 0 : index
    %c0_17 = arith.constant 0 : index
    %23 = vector.load %arg7[%c0_16, %c0_17] : memref<128x128xbf16, #tpu.memory_space<vmem>>, vector<128x128xbf16>
    tpu.vector_store %arg7[%c0_16, %c0_17], %22 {strides = array<i32>} : memref<128x128xbf16, #tpu.memory_space<vmem>>, vector<128x128xbf16>,
    return
  }
  func.func @transform_0(%arg0: i32) -> (i32, i32) {
    %c0_i32 = arith.constant 0 : i32
    %c0_i32_0 = arith.constant 0 : i32
    return %arg0, %c0_i32 : i32, i32
  }
  func.func @transform_1(%arg0: i32) -> (i32, i32) {
    %c0_i32 = arith.constant 0 : i32
    %c0_i32_0 = arith.constant 0 : i32
    %c0_i32_1 = arith.constant 0 : i32
    return %c0_i32, %c0_i32_0 : i32, i32
  }
  func.func @transform_2(%arg0: i32) -> (i32, i32) {
    %c0_i32 = arith.constant 0 : i32
    %c0_i32_0 = arith.constant 0 : i32
    %c0_i32_1 = arith.constant 0 : i32
    return %c0_i32, %c0_i32_0 : i32, i32
  }
  func.func @transform_3(%arg0: i32) -> (i32, i32) {
    %c0_i32 = arith.constant 0 : i32
    %c0_i32_0 = arith.constant 0 : i32
    %c0_i32_1 = arith.constant 0 : i32
    return %c0_i32, %c0_i32_0 : i32, i32
  }
  func.func @transform_4(%arg0: i32) -> (i32, i32) {
    %c0_i32 = arith.constant 0 : i32
    %c0_i32_0 = arith.constant 0 : i32
    %c0_i32_1 = arith.constant 0 : i32
    return %c0_i32, %c0_i32_0 : i32, i32
  }
  func.func @transform_5(%arg0: i32) -> (i32, i32) {
    %c0_i32 = arith.constant 0 : i32
    %c0_i32_0 = arith.constant 0 : i32
    return %arg0, %c0_i32 : i32, i32
  }
  func.func @transform_6(%arg0: i32) -> (i32, i32) {
    %c0_i32 = arith.constant 0 : i32
    %c0_i32_0 = arith.constant 0 : i32
    return %arg0, %c0_i32 : i32, i32
  }
}

</mosaic_0001>

<llo_original>
// kernel: tpu_custom_call.1
$region0: #{tpu_custom_call.1}
  #allocation0 [shape = 'u32[]', space=smem, size = 0x4, offset = 0x4, fixed_abs, tag = 'smem constant byte address 0x4 - core index']
  #allocation1 [shape = 'u32[144,128]{1,0:T(1,128)}', space=vmem, size = 0x12000, scoped, tag = 'internal scratch']
  %s0 = inlined_call_operand.hbm [shape: f32[256,1792], index: 0, kind: input, shape index: {}]
  %s1 = inlined_call_operand.hbm [shape: f32[1792,128], index: 1, kind: input, shape index: {}]
  %s2 = inlined_call_operand.hbm [shape: f32[1,128], index: 2, kind: input, shape index: {}]
  %s3 = inlined_call_operand.hbm [shape: f32[128,128], index: 3, kind: input, shape index: {}]
  %s4 = inlined_call_operand.hbm [shape: f32[1,128], index: 4, kind: input, shape index: {}]
  %s5 = inlined_call_operand.hbm [shape: f32[256,128], index: 5, kind: output, shape index: {0}]
  %s6 = inlined_call_operand.hbm [shape: bf16[256,128], index: 6, kind: output, shape index: {1}]
  %7 = xla_tuple %s5, %s6
  %s8 = sld [smem:[#allocation0]]
  $region81: #{tpu_custom_call.1} parent=0
    _
  %s10 = ssub.s32 1, %s8
  %s11 = scalar_select 0, %s10, %s8
  $region1: #{tpu_custom_call.1} parent=0
    #allocation2 [shape = 'u8[1835008]{0}', space=vmem, size = 0x1c0000, scoped, tag = 'input window, operand 0']
    #allocation3 [shape = 's32[2]{0}', space=sflag, size = 0x8, scoped, tag = 'scoped memory for tpu_custom_call.1']
    #allocation4 [shape = 's32[2]{0}', space=sflag, size = 0x8, scoped, tag = 'scoped memory for tpu_custom_call.1']
    #allocation5 [shape = 'u8[917504]{0}', space=vmem, size = 0xe0000, scoped, tag = 'input window, operand 1, single buffered']
    #allocation6 [shape = 's32[1]{0}', space=sflag, size = 0x4, scoped, tag = 'scoped memory for tpu_custom_call.1']
    #allocation7 [shape = 'u8[512]{0}', space=vmem, size = 0x400, scoped, tag = 'input window, operand 2, single buffered']
    #allocation8 [shape = 'u8[65536]{0}', space=vmem, size = 0x10000, scoped, tag = 'input window, operand 3, single buffered']
    #allocation9 [shape = 's32[1]{0}', space=sflag, size = 0x4, scoped, tag = 'scoped memory for tpu_custom_call.1']
    #allocation10 [shape = 'u8[512]{0}', space=vmem, size = 0x400, scoped, tag = 'input window, operand 4, single buffered']
    #allocation11 [shape = 'u8[131072]{0}', space=vmem, size = 0x20000, scoped, tag = 'output window, operand 0']
    #allocation12 [shape = 'u8[65536]{0}', space=vmem, size = 0x10000, scoped, tag = 'output window, operand 1']
    #allocation13 [shape = 's32[2]{0}', space=sflag, size = 0x8, scoped, tag = 'scoped memory for tpu_custom_call.1']
    %12 = vsyncpa [#allocation3], 0
    %s13 = scalar_lea.sflag [#allocation3], 1
    %14 = vsyncpa %s13, 0
    %15 = vsyncpa [#allocation6], 0
    %16 = vsyncpa [#allocation9], 0
    %17 = vsyncpa [#allocation4], 0
    %s18 = scalar_lea.sflag [#allocation4], 1
    %19 = vsyncpa %s18, 0
    %20 = vsyncpa [#allocation13], 0
    %s21 = scalar_lea.sflag [#allocation13], 1
    %22 = vsyncpa %s21, 0
    loop: start=0, step=1, limit=4
    $region2: #{tpu_custom_call.1} parent=1 // loop_pre_header
      _
    $region3: #{tpu_custom_call.1} parent=1 // loop_header
      %s24 = sphi 0, %s28
      %p25 = scmp.ge.s32.totalorder %s24, 4
      %s34 = sphi 0, %s36
      %s37 = sphi 0, %s34
      %s38 = sphi 0, %s37
      %s54 = sphi 0, %s38
      %s58 = sphi 0, %s58
      %s60 = sphi 0, %s58
      %s61 = sphi 0, %s60
      %s75 = sphi 0, %s61
      %s79 = sphi 0, %s79
      %s81 = sphi 0, %s79
      %s82 = sphi 0, %s81
      %s96 = sphi 0, %s82
      %s100 = sphi 0, %s100
      %s102 = sphi 0, %s100
      %s103 = sphi 0, %s102
      %s117 = sphi 0, %s103
      %s121 = sphi 0, %s121
      %s123 = sphi 0, %s121
      %s124 = sphi 0, %s123
      %s138 = sphi 0, %s124
      %s144 = sphi 0, %s146
      %s147 = sphi 0, %s144
      %s148 = sphi 0, %s147
      %s164 = sphi 0, %s148
      %s170 = sphi 0, %s172
      %s173 = sphi 0, %s170
      %s174 = sphi 0, %s173
      %s190 = sphi 0, %s174
    $region4: #{tpu_custom_call.1} parent=1 // loop_header_branch
      %27 = sbr.rel (%p25) target = $region8
    $region5: #{tpu_custom_call.1} parent=1 // loop_body
      %s29 = ssub.s32 %s24, 1
      %s30 = ssub.s32 %s24, 2
      %s31 = sadd.s32 %s24, 1
      %s32 = ssub.s32 %s24, %s31
      %p33 = scmp.eq.s32.totalorder %s32, 0
      %s35 = sadd.s32 %s34, 1
      %s36 = scalar_select %p33, %s34, %s35
      %p39 = pneg %p33
      %p40 = scmp.eq.s32.totalorder %s24, 1
      %p41 = por %p39, %p40
      %p42 = scmp.ne.s32.totalorder %s34, %s37
      %p43 = scmp.eq.s32.totalorder %s24, 0
      %p44 = por %p42, %p43
      %p45 = scmp.ne.s32.totalorder %s34, %s37
      %p46 = scmp.eq.s32.totalorder %s29, 1
      %p47 = por %p45, %p46
      %p48 = scmp.ne.s32.totalorder %s37, %s38
      %p49 = scmp.eq.s32.totalorder %s29, 0
      %p50 = por %p48, %p49
      %p51 = scmp.ne.s32.totalorder %s37, %s38
      %p52 = scmp.eq.s32.totalorder %s30, 1
      %p53 = por %p51, %p52
      %p55 = scmp.ne.s32.totalorder %s38, %s54
      %p56 = scmp.eq.s32.totalorder %s30, 0
      %p57 = por %p55, %p56
      %s59 = sadd.s32 %s58, 1
      %p62 = scmp.eq.s32.totalorder %s24, 1
      %p63 = scmp.ne.s32.totalorder %s58, %s60
      %p64 = scmp.eq.s32.totalorder %s24, 0
      %p65 = por %p63, %p64
      %p66 = scmp.ne.s32.totalorder %s58, %s60
      %p67 = scmp.eq.s32.totalorder %s29, 1
      %p68 = por %p66, %p67
      %p69 = scmp.ne.s32.totalorder %s60, %s61
      %p70 = scmp.eq.s32.totalorder %s29, 0
      %p71 = por %p69, %p70
      %p72 = scmp.ne.s32.totalorder %s60, %s61
      %p73 = scmp.eq.s32.totalorder %s30, 1
      %p74 = por %p72, %p73
      %p76 = scmp.ne.s32.totalorder %s61, %s75
      %p77 = scmp.eq.s32.totalorder %s30, 0
      %p78 = por %p76, %p77
      %s80 = sadd.s32 %s79, 1
      %p83 = scmp.eq.s32.totalorder %s24, 1
      %p84 = scmp.ne.s32.totalorder %s79, %s81
      %p85 = scmp.eq.s32.totalorder %s24, 0
      %p86 = por %p84, %p85
      %p87 = scmp.ne.s32.totalorder %s79, %s81
      %p88 = scmp.eq.s32.totalorder %s29, 1
      %p89 = por %p87, %p88
      %p90 = scmp.ne.s32.totalorder %s81, %s82
      %p91 = scmp.eq.s32.totalorder %s29, 0
      %p92 = por %p90, %p91
      %p93 = scmp.ne.s32.totalorder %s81, %s82
      %p94 = scmp.eq.s32.totalorder %s30, 1
      %p95 = por %p93, %p94
      %p97 = scmp.ne.s32.totalorder %s82, %s96
      %p98 = scmp.eq.s32.totalorder %s30, 0
      %p99 = por %p97, %p98
      %s101 = sadd.s32 %s100, 1
      %p104 = scmp.eq.s32.totalorder %s24, 1
      %p105 = scmp.ne.s32.totalorder %s100, %s102
      %p106 = scmp.eq.s32.totalorder %s24, 0
      %p107 = por %p105, %p106
      %p108 = scmp.ne.s32.totalorder %s100, %s102
      %p109 = scmp.eq.s32.totalorder %s29, 1
      %p110 = por %p108, %p109
      %p111 = scmp.ne.s32.totalorder %s102, %s103
      %p112 = scmp.eq.s32.totalorder %s29, 0
      %p113 = por %p111, %p112
      %p114 = scmp.ne.s32.totalorder %s102, %s103
      %p115 = scmp.eq.s32.totalorder %s30, 1
      %p116 = por %p114, %p115
      %p118 = scmp.ne.s32.totalorder %s103, %s117
      %p119 = scmp.eq.s32.totalorder %s30, 0
      %p120 = por %p118, %p119
      %s122 = sadd.s32 %s121, 1
      %p125 = scmp.eq.s32.totalorder %s24, 1
      %p126 = scmp.ne.s32.totalorder %s121, %s123
      %p127 = scmp.eq.s32.totalorder %s24, 0
      %p128 = por %p126, %p127
      %p129 = scmp.ne.s32.totalorder %s121, %s123
      %p130 = scmp.eq.s32.totalorder %s29, 1
      %p131 = por %p129, %p130
      %p132 = scmp.ne.s32.totalorder %s123, %s124
      %p133 = scmp.eq.s32.totalorder %s29, 0
      %p134 = por %p132, %p133
      %p135 = scmp.ne.s32.totalorder %s123, %s124
      %p136 = scmp.eq.s32.totalorder %s30, 1
      %p137 = por %p135, %p136
      %p139 = scmp.ne.s32.totalorder %s124, %s138
      %p140 = scmp.eq.s32.totalorder %s30, 0
      %p141 = por %p139, %p140
      %s142 = ssub.s32 %s24, %s31
      %p143 = scmp.eq.s32.totalorder %s142, 0
      %s145 = sadd.s32 %s144, 1
      %s146 = scalar_select %p143, %s144, %s145
      %p149 = pneg %p143
      %p150 = scmp.eq.s32.totalorder %s24, 1
      %p151 = por %p149, %p150
      %p152 = scmp.ne.s32.totalorder %s144, %s147
      %p153 = scmp.eq.s32.totalorder %s24, 0
      %p154 = por %p152, %p153
      %p155 = scmp.ne.s32.totalorder %s144, %s147
      %p156 = scmp.eq.s32.totalorder %s29, 1
      %p157 = por %p155, %p156
      %p158 = scmp.ne.s32.totalorder %s147, %s148
      %p159 = scmp.eq.s32.totalorder %s29, 0
      %p160 = por %p158, %p159
      %p161 = scmp.ne.s32.totalorder %s147, %s148
      %p162 = scmp.eq.s32.totalorder %s30, 1
      %p163 = por %p161, %p162
      %p165 = scmp.ne.s32.totalorder %s148, %s164
      %p166 = scmp.eq.s32.totalorder %s30, 0
      %p167 = por %p165, %p166
      %s168 = ssub.s32 %s24, %s31
      %p169 = scmp.eq.s32.totalorder %s168, 0
      %s171 = sadd.s32 %s170, 1
      %s172 = scalar_select %p169, %s170, %s171
      %p175 = pneg %p169
      %p176 = scmp.eq.s32.totalorder %s24, 1
      %p177 = por %p175, %p176
      %p178 = scmp.ne.s32.totalorder %s170, %s173
      %p179 = scmp.eq.s32.totalorder %s24, 0
      %p180 = por %p178, %p179
      %p181 = scmp.ne.s32.totalorder %s170, %s173
      %p182 = scmp.eq.s32.totalorder %s29, 1
      %p183 = por %p181, %p182
      %p184 = scmp.ne.s32.totalorder %s173, %s174
      %p185 = scmp.eq.s32.totalorder %s29, 0
      %p186 = por %p184, %p185
      %p187 = scmp.ne.s32.totalorder %s173, %s174
      %p188 = scmp.eq.s32.totalorder %s30, 1
      %p189 = por %p187, %p188
      %p191 = scmp.ne.s32.totalorder %s174, %s190
      %p192 = scmp.eq.s32.totalorder %s30, 0
      %p193 = por %p191, %p192
      %p194 = scmp.le.s32.totalorder 1, %s24
      %p195 = scmp.lt.s32.totalorder %s24, 3
      %p196 = pnand %p194, %p195
      %p197 = pneg %p196
      // Predicated region
      $region9: #{tpu_custom_call.1} parent=5 // pred_check
        _
      $region10: #{tpu_custom_call.1} parent=5 // pred_check_branch
        %199 = sbr.rel (%p196) target = $region12
      $region11: #{tpu_custom_call.1} parent=5 // pred_region
        %s200 = ssub.s32 %s24, 1
        // Predicated region
        $region13: #{tpu_custom_call.1} parent=11 // pred_check
          %p201 = pneg %p71
        $region14: #{tpu_custom_call.1} parent=11 // pred_check_branch
          %203 = sbr.rel (%p201) target = $region16
        $region15: #{tpu_custom_call.1} parent=11 // pred_region
          %s205 = ssub.s32 28672, 28672
          %206 = vsyncadd [#allocation6], %s205
          %s207 = sshll.u32 [#allocation5], 4
          %s208 = int_to_ptr.vmem [resolvable:$true] %s207
          %213 = dma.hbm_to_vmem [thread:$0]  %s1, 28672, %s208, [#allocation6], 128, 128, 8
        $region16: #{tpu_custom_call.1} parent=11 // pred_fallthru
          _
        // Predicated region
        $region17: #{tpu_custom_call.1} parent=11 // pred_check
          %p214 = pneg %p92
        $region18: #{tpu_custom_call.1} parent=11 // pred_check_branch
          %216 = sbr.rel (%p214) target = $region20
        $region19: #{tpu_custom_call.1} parent=11 // pred_region
          %s218 = ssub.s32 16, 16
          %219 = vsyncadd [#allocation6], %s218
          %s221 = sshll.u32 [#allocation7], 4
          %s222 = int_to_ptr.vmem [resolvable:$true] %s221
          %224 = dma.hbm_to_vmem [thread:$0]  %s2, 16, %s222, [#allocation6]
        $region20: #{tpu_custom_call.1} parent=11 // pred_fallthru
          _
        // Predicated region
        $region21: #{tpu_custom_call.1} parent=11 // pred_check
          %p225 = pneg %p113
        $region22: #{tpu_custom_call.1} parent=11 // pred_check_branch
          %227 = sbr.rel (%p225) target = $region24
        $region23: #{tpu_custom_call.1} parent=11 // pred_region
          %s229 = ssub.s32 2048, 2048
          %230 = vsyncadd [#allocation9], %s229
          %s231 = sshll.u32 [#allocation8], 4
          %s232 = int_to_ptr.vmem [resolvable:$true] %s231
          %237 = dma.hbm_to_vmem [thread:$0]  %s3, 2048, %s232, [#allocation9], 128, 128, 8
        $region24: #{tpu_custom_call.1} parent=11 // pred_fallthru
          _
        // Predicated region
        $region25: #{tpu_custom_call.1} parent=11 // pred_check
          %p238 = pneg %p134
        $region26: #{tpu_custom_call.1} parent=11 // pred_check_branch
          %240 = sbr.rel (%p238) target = $region28
        $region27: #{tpu_custom_call.1} parent=11 // pred_region
          %s242 = ssub.s32 16, 16
          %243 = vsyncadd [#allocation9], %s242
          %s245 = sshll.u32 [#allocation10], 4
          %s246 = int_to_ptr.vmem [resolvable:$true] %s245
          %248 = dma.hbm_to_vmem [thread:$0]  %s4, 16, %s246, [#allocation9]
        $region28: #{tpu_custom_call.1} parent=11 // pred_fallthru
          _
      $region12: #{tpu_custom_call.1} parent=5 // pred_fallthru
        _
      %p249 = scmp.lt.s32.totalorder %s24, 2
      // Predicated region
      $region29: #{tpu_custom_call.1} parent=5 // pred_check
        %p250 = pneg %p249
      $region30: #{tpu_custom_call.1} parent=5 // pred_check_branch
        %252 = sbr.rel (%p250) target = $region32
      $region31: #{tpu_custom_call.1} parent=5 // pred_region
        // Predicated region
        $region33: #{tpu_custom_call.1} parent=31 // pred_check
          %p253 = pneg %p44
        $region34: #{tpu_custom_call.1} parent=31 // pred_check_branch
          %255 = sbr.rel (%p253) target = $region36
        $region35: #{tpu_custom_call.1} parent=31 // pred_region
          %s256 = sand.u32 %s34, 1
          %s257 = scalar_lea.sflag [#allocation3], %s256
          %s258 = sand.u32 %s34, 1
          %s259 = smul.addr %s258, 1792
          %s260 = scalar_lea.vmem [#allocation2], %s259
          %s261 = smul.u32 16, %s24
          %s263 = ssub.s32 28672, 28672
          %264 = vsyncadd %s257, %s263
          %s265 = smul.addr %s261, 14
          %s266 = smul.addr %s265, 128
          %s267 = scalar_lea.hbm %s0, %s266
          %s268 = sshll.u32 %s260, 4
          %s269 = int_to_ptr.vmem [resolvable:$true] %s268
          %274 = dma.hbm_to_vmem [thread:$0]  %s267, 28672, %s269, %s257, 1792, 1792, 112
        $region36: #{tpu_custom_call.1} parent=31 // pred_fallthru
          _
      $region32: #{tpu_custom_call.1} parent=5 // pred_fallthru
        _
      %p275 = scmp.le.s32.totalorder 1, %s24
      %p276 = scmp.lt.s32.totalorder %s24, 3
      %p277 = pnand %p275, %p276
      %p278 = pneg %p277
      // Predicated region
      $region37: #{tpu_custom_call.1} parent=5 // pred_check
        _
      $region38: #{tpu_custom_call.1} parent=5 // pred_check_branch
        %280 = sbr.rel (%p277) target = $region40
      $region39: #{tpu_custom_call.1} parent=5 // pred_region
        %s281 = ssub.s32 %s24, 1
        %s282 = sand.u32 %s37, 1
        %s283 = scalar_lea.sflag [#allocation3], %s282
        %s284 = sand.u32 %s37, 1
        %s285 = smul.addr %s284, 1792
        %s286 = scalar_lea.vmem [#allocation2], %s285
        // Predicated region
        $region41: #{tpu_custom_call.1} parent=39 // pred_check
          %p287 = pneg %p50
        $region42: #{tpu_custom_call.1} parent=39 // pred_check_branch
          %289 = sbr.rel (%p287) target = $region44
        $region43: #{tpu_custom_call.1} parent=39 // pred_region
          %290 = dma.done %s283, 28672
        $region44: #{tpu_custom_call.1} parent=39 // pred_fallthru
          _
        // Predicated region
        $region45: #{tpu_custom_call.1} parent=39 // pred_check
          %p291 = pneg %p71
        $region46: #{tpu_custom_call.1} parent=39 // pred_check_branch
          %293 = sbr.rel (%p291) target = $region48
        $region47: #{tpu_custom_call.1} parent=39 // pred_region
          %294 = dma.done [#allocation6], 28672
        $region48: #{tpu_custom_call.1} parent=39 // pred_fallthru
          _
        // Predicated region
        $region49: #{tpu_custom_call.1} parent=39 // pred_check
          %p295 = pneg %p92
        $region50: #{tpu_custom_call.1} parent=39 // pred_check_branch
          %297 = sbr.rel (%p295) target = $region52
        $region51: #{tpu_custom_call.1} parent=39 // pred_region
          %298 = dma.done [#allocation6], 16
        $region52: #{tpu_custom_call.1} parent=39 // pred_fallthru
          _
        // Predicated region
        $region53: #{tpu_custom_call.1} parent=39 // pred_check
          %p299 = pneg %p113
        $region54: #{tpu_custom_call.1} parent=39 // pred_check_branch
          %301 = sbr.rel (%p299) target = $region56
        $region55: #{tpu_custom_call.1} parent=39 // pred_region
          %302 = dma.done [#allocation9], 2048
        $region56: #{tpu_custom_call.1} parent=39 // pred_fallthru
          _
        // Predicated region
        $region57: #{tpu_custom_call.1} parent=39 // pred_check
          %p303 = pneg %p134
        $region58: #{tpu_custom_call.1} parent=39 // pred_check_branch
          %305 = sbr.rel (%p303) target = $region60
        $region59: #{tpu_custom_call.1} parent=39 // pred_region
          %306 = dma.done [#allocation9], 16
        $region60: #{tpu_custom_call.1} parent=39 // pred_fallthru
          _
        %s307 = sand.u32 %s37, 1
        %s308 = scalar_lea.sflag [#allocation3], %s307
        %s309 = sand.u32 %s37, 1
        %s310 = smul.addr %s309, 1792
        %s311 = scalar_lea.vmem [#allocation2], %s310
        %p312 = pneg %p50
        %p313 = pneg %p47
        %p314 = pneg %p71
        %p315 = pneg %p68
        %p316 = pneg %p92
        %p317 = pneg %p89
        %p318 = pneg %p113
        %p319 = pneg %p110
        %p320 = pneg %p134
        %p321 = pneg %p131
        %p322 = pneg %p160
        %p323 = pneg %p157
        %s324 = sand.u32 %s147, 1
        %s325 = scalar_lea.sflag [#allocation4], %s324
        %s326 = sand.u32 %s147, 1
        %s327 = smul.addr %s326, 128
        %s328 = scalar_lea.vmem [#allocation11], %s327
        %p329 = pneg %p186
        %p330 = pneg %p183
        %s331 = sand.u32 %s173, 1
        %s332 = scalar_lea.sflag [#allocation13], %s331
        %s333 = sand.u32 %s173, 1
        %s334 = smul.addr %s333, 64
        %s335 = scalar_lea.vmem [#allocation12], %s334
        %s336 = smul.u32 16, %s29
        %s337 = smul.u32 16, %s29
        %s338 = smul.u32 16, %s29
        %v339 = vld [vmem:[%s286] sm:$0xff]
        %v340 = vld [vmem:[%s286 + $0x8] sm:$0xff]
        %v341 = vld [vmem:[%s286 + $0x10] sm:$0xff]
        %v342 = vld [vmem:[%s286 + $0x18] sm:$0xff]
        %v343 = vld [vmem:[%s286 + $0x20] sm:$0xff]
        %v344 = vld [vmem:[%s286 + $0x28] sm:$0xff]
        %v345 = vld [vmem:[%s286 + $0x30] sm:$0xff]
        %v346 = vld [vmem:[%s286 + $0x38] sm:$0xff]
        %v347 = vld [vmem:[%s286 + $0x40] sm:$0xff]
        %v348 = vld [vmem:[%s286 + $0x48] sm:$0xff]
        %v349 = vld [vmem:[%s286 + $0x50] sm:$0xff]
        %v350 = vld [vmem:[%s286 + $0x58] sm:$0xff]
        %v351 = vld [vmem:[%s286 + $0x60] sm:$0xff]
        %v352 = vld [vmem:[%s286 + $0x68] sm:$0xff]
        %v353 = vld [vmem:[%s286 + $0x70] sm:$0xff]
        %v354 = vld [vmem:[%s286 + $0x78] sm:$0xff]
        %v355 = vld [vmem:[%s286 + $0x80] sm:$0xff]
        %v356 = vld [vmem:[%s286 + $0x88] sm:$0xff]
        %v357 = vld [vmem:[%s286 + $0x90] sm:$0xff]
        %v358 = vld [vmem:[%s286 + $0x98] sm:$0xff]
        %v359 = vld [vmem:[%s286 + $0xa0] sm:$0xff]
        %v360 = vld [vmem:[%s286 + $0xa8] sm:$0xff]
        %v361 = vld [vmem:[%s286 + $0xb0] sm:$0xff]
        %v362 = vld [vmem:[%s286 + $0xb8] sm:$0xff]
        %v363 = vld [vmem:[%s286 + $0xc0] sm:$0xff]
        %v364 = vld [vmem:[%s286 + $0xc8] sm:$0xff]
        %v365 = vld [vmem:[%s286 + $0xd0] sm:$0xff]
        %v366 = vld [vmem:[%s286 + $0xd8] sm:$0xff]
        %v367 = vld [vmem:[%s286 + $0xe0] sm:$0xff]
        %v368 = vld [vmem:[%s286 + $0xe8] sm:$0xff]
        %v369 = vld [vmem:[%s286 + $0xf0] sm:$0xff]
        %v370 = vld [vmem:[%s286 + $0xf8] sm:$0xff]
        %v371 = vld [vmem:[%s286 + $0x100] sm:$0xff]
        %v372 = vld [vmem:[%s286 + $0x108] sm:$0xff]
        %v373 = vld [vmem:[%s286 + $0x110] sm:$0xff]
        %v374 = vld [vmem:[%s286 + $0x118] sm:$0xff]
        %v375 = vld [vmem:[%s286 + $0x120] sm:$0xff]
        %v376 = vld [vmem:[%s286 + $0x128] sm:$0xff]
        %v377 = vld [vmem:[%s286 + $0x130] sm:$0xff]
        %v378 = vld [vmem:[%s286 + $0x138] sm:$0xff]
        %v379 = vld [vmem:[%s286 + $0x140] sm:$0xff]
        %v380 = vld [vmem:[%s286 + $0x148] sm:$0xff]
        %v381 = vld [vmem:[%s286 + $0x150] sm:$0xff]
        %v382 = vld [vmem:[%s286 + $0x158] sm:$0xff]
        %v383 = vld [vmem:[%s286 + $0x160] sm:$0xff]
        %v384 = vld [vmem:[%s286 + $0x168] sm:$0xff]
        %v385 = vld [vmem:[%s286 + $0x170] sm:$0xff]
        %v386 = vld [vmem:[%s286 + $0x178] sm:$0xff]
        %v387 = vld [vmem:[%s286 + $0x180] sm:$0xff]
        %v388 = vld [vmem:[%s286 + $0x188] sm:$0xff]
        %v389 = vld [vmem:[%s286 + $0x190] sm:$0xff]
        %v390 = vld [vmem:[%s286 + $0x198] sm:$0xff]
        %v391 = vld [vmem:[%s286 + $0x1a0] sm:$0xff]
        %v392 = vld [vmem:[%s286 + $0x1a8] sm:$0xff]
        %v393 = vld [vmem:[%s286 + $0x1b0] sm:$0xff]
        %v394 = vld [vmem:[%s286 + $0x1b8] sm:$0xff]
        %v395 = vld [vmem:[%s286 + $0x1c0] sm:$0xff]
        %v396 = vld [vmem:[%s286 + $0x1c8] sm:$0xff]
        %v397 = vld [vmem:[%s286 + $0x1d0] sm:$0xff]
        %v398 = vld [vmem:[%s286 + $0x1d8] sm:$0xff]
        %v399 = vld [vmem:[%s286 + $0x1e0] sm:$0xff]
        %v400 = vld [vmem:[%s286 + $0x1e8] sm:$0xff]
        %v401 = vld [vmem:[%s286 + $0x1f0] sm:$0xff]
        %v402 = vld [vmem:[%s286 + $0x1f8] sm:$0xff]
        %v403 = vld [vmem:[%s286 + $0x200] sm:$0xff]
        %v404 = vld [vmem:[%s286 + $0x208] sm:$0xff]
        %v405 = vld [vmem:[%s286 + $0x210] sm:$0xff]
        %v406 = vld [vmem:[%s286 + $0x218] sm:$0xff]
        %v407 = vld [vmem:[%s286 + $0x220] sm:$0xff]
        %v408 = vld [vmem:[%s286 + $0x228] sm:$0xff]
        %v409 = vld [vmem:[%s286 + $0x230] sm:$0xff]
        %v410 = vld [vmem:[%s286 + $0x238] sm:$0xff]
        %v411 = vld [vmem:[%s286 + $0x240] sm:$0xff]
        %v412 = vld [vmem:[%s286 + $0x248] sm:$0xff]
        %v413 = vld [vmem:[%s286 + $0x250] sm:$0xff]
        %v414 = vld [vmem:[%s286 + $0x258] sm:$0xff]
        %v415 = vld [vmem:[%s286 + $0x260] sm:$0xff]
        %v416 = vld [vmem:[%s286 + $0x268] sm:$0xff]
        %v417 = vld [vmem:[%s286 + $0x270] sm:$0xff]
        %v418 = vld [vmem:[%s286 + $0x278] sm:$0xff]
        %v419 = vld [vmem:[%s286 + $0x280] sm:$0xff]
        %v420 = vld [vmem:[%s286 + $0x288] sm:$0xff]
        %v421 = vld [vmem:[%s286 + $0x290] sm:$0xff]
        %v422 = vld [vmem:[%s286 + $0x298] sm:$0xff]
        %v423 = vld [vmem:[%s286 + $0x2a0] sm:$0xff]
        %v424 = vld [vmem:[%s286 + $0x2a8] sm:$0xff]
        %v425 = vld [vmem:[%s286 + $0x2b0] sm:$0xff]
        %v426 = vld [vmem:[%s286 + $0x2b8] sm:$0xff]
        %v427 = vld [vmem:[%s286 + $0x2c0] sm:$0xff]
        %v428 = vld [vmem:[%s286 + $0x2c8] sm:$0xff]
        %v429 = vld [vmem:[%s286 + $0x2d0] sm:$0xff]
        %v430 = vld [vmem:[%s286 + $0x2d8] sm:$0xff]
        %v431 = vld [vmem:[%s286 + $0x2e0] sm:$0xff]
        %v432 = vld [vmem:[%s286 + $0x2e8] sm:$0xff]
        %v433 = vld [vmem:[%s286 + $0x2f0] sm:$0xff]
        %v434 = vld [vmem:[%s286 + $0x2f8] sm:$0xff]
        %v435 = vld [vmem:[%s286 + $0x300] sm:$0xff]
        %v436 = vld [vmem:[%s286 + $0x308] sm:$0xff]
        %v437 = vld [vmem:[%s286 + $0x310] sm:$0xff]
        %v438 = vld [vmem:[%s286 + $0x318] sm:$0xff]
        %v439 = vld [vmem:[%s286 + $0x320] sm:$0xff]
        %v440 = vld [vmem:[%s286 + $0x328] sm:$0xff]
        %v441 = vld [vmem:[%s286 + $0x330] sm:$0xff]
        %v442 = vld [vmem:[%s286 + $0x338] sm:$0xff]
        %v443 = vld [vmem:[%s286 + $0x340] sm:$0xff]
        %v444 = vld [vmem:[%s286 + $0x348] sm:$0xff]
        %v445 = vld [vmem:[%s286 + $0x350] sm:$0xff]
        %v446 = vld [vmem:[%s286 + $0x358] sm:$0xff]
        %v447 = vld [vmem:[%s286 + $0x360] sm:$0xff]
        %v448 = vld [vmem:[%s286 + $0x368] sm:$0xff]
        %v449 = vld [vmem:[%s286 + $0x370] sm:$0xff]
        %v450 = vld [vmem:[%s286 + $0x378] sm:$0xff]
        %v451 = vld [vmem:[%s286 + $0x380] sm:$0xff]
        %v452 = vld [vmem:[%s286 + $0x388] sm:$0xff]
        %v453 = vld [vmem:[%s286 + $0x390] sm:$0xff]
        %v454 = vld [vmem:[%s286 + $0x398] sm:$0xff]
        %v455 = vld [vmem:[%s286 + $0x3a0] sm:$0xff]
        %v456 = vld [vmem:[%s286 + $0x3a8] sm:$0xff]
        %v457 = vld [vmem:[%s286 + $0x3b0] sm:$0xff]
        %v458 = vld [vmem:[%s286 + $0x3b8] sm:$0xff]
        %v459 = vld [vmem:[%s286 + $0x3c0] sm:$0xff]
        %v460 = vld [vmem:[%s286 + $0x3c8] sm:$0xff]
        %v461 = vld [vmem:[%s286 + $0x3d0] sm:$0xff]
        %v462 = vld [vmem:[%s286 + $0x3d8] sm:$0xff]
        %v463 = vld [vmem:[%s286 + $0x3e0] sm:$0xff]
        %v464 = vld [vmem:[%s286 + $0x3e8] sm:$0xff]
        %v465 = vld [vmem:[%s286 + $0x3f0] sm:$0xff]
        %v466 = vld [vmem:[%s286 + $0x3f8] sm:$0xff]
        %v467 = vld [vmem:[%s286 + $0x400] sm:$0xff]
        %v468 = vld [vmem:[%s286 + $0x408] sm:$0xff]
        %v469 = vld [vmem:[%s286 + $0x410] sm:$0xff]
        %v470 = vld [vmem:[%s286 + $0x418] sm:$0xff]
        %v471 = vld [vmem:[%s286 + $0x420] sm:$0xff]
        %v472 = vld [vmem:[%s286 + $0x428] sm:$0xff]
        %v473 = vld [vmem:[%s286 + $0x430] sm:$0xff]
        %v474 = vld [vmem:[%s286 + $0x438] sm:$0xff]
        %v475 = vld [vmem:[%s286 + $0x440] sm:$0xff]
        %v476 = vld [vmem:[%s286 + $0x448] sm:$0xff]
        %v477 = vld [vmem:[%s286 + $0x450] sm:$0xff]
        %v478 = vld [vmem:[%s286 + $0x458] sm:$0xff]
        %v479 = vld [vmem:[%s286 + $0x460] sm:$0xff]
        %v480 = vld [vmem:[%s286 + $0x468] sm:$0xff]
        %v481 = vld [vmem:[%s286 + $0x470] sm:$0xff]
        %v482 = vld [vmem:[%s286 + $0x478] sm:$0xff]
        %v483 = vld [vmem:[%s286 + $0x480] sm:$0xff]
        %v484 = vld [vmem:[%s286 + $0x488] sm:$0xff]
        %v485 = vld [vmem:[%s286 + $0x490] sm:$0xff]
        %v486 = vld [vmem:[%s286 + $0x498] sm:$0xff]
        %v487 = vld [vmem:[%s286 + $0x4a0] sm:$0xff]
        %v488 = vld [vmem:[%s286 + $0x4a8] sm:$0xff]
        %v489 = vld [vmem:[%s286 + $0x4b0] sm:$0xff]
        %v490 = vld [vmem:[%s286 + $0x4b8] sm:$0xff]
        %v491 = vld [vmem:[%s286 + $0x4c0] sm:$0xff]
        %v492 = vld [vmem:[%s286 + $0x4c8] sm:$0xff]
        %v493 = vld [vmem:[%s286 + $0x4d0] sm:$0xff]
        %v494 = vld [vmem:[%s286 + $0x4d8] sm:$0xff]
        %v495 = vld [vmem:[%s286 + $0x4e0] sm:$0xff]
        %v496 = vld [vmem:[%s286 + $0x4e8] sm:$0xff]
        %v497 = vld [vmem:[%s286 + $0x4f0] sm:$0xff]
        %v498 = vld [vmem:[%s286 + $0x4f8] sm:$0xff]
        %v499 = vld [vmem:[%s286 + $0x500] sm:$0xff]
        %v500 = vld [vmem:[%s286 + $0x508] sm:$0xff]
        %v501 = vld [vmem:[%s286 + $0x510] sm:$0xff]
        %v502 = vld [vmem:[%s286 + $0x518] sm:$0xff]
        %v503 = vld [vmem:[%s286 + $0x520] sm:$0xff]
        %v504 = vld [vmem:[%s286 + $0x528] sm:$0xff]
        %v505 = vld [vmem:[%s286 + $0x530] sm:$0xff]
        %v506 = vld [vmem:[%s286 + $0x538] sm:$0xff]
        %v507 = vld [vmem:[%s286 + $0x540] sm:$0xff]
        %v508 = vld [vmem:[%s286 + $0x548] sm:$0xff]
        %v509 = vld [vmem:[%s286 + $0x550] sm:$0xff]
        %v510 = vld [vmem:[%s286 + $0x558] sm:$0xff]
        %v511 = vld [vmem:[%s286 + $0x560] sm:$0xff]
        %v512 = vld [vmem:[%s286 + $0x568] sm:$0xff]
        %v513 = vld [vmem:[%s286 + $0x570] sm:$0xff]
        %v514 = vld [vmem:[%s286 + $0x578] sm:$0xff]
        %v515 = vld [vmem:[%s286 + $0x580] sm:$0xff]
        %v516 = vld [vmem:[%s286 + $0x588] sm:$0xff]
        %v517 = vld [vmem:[%s286 + $0x590] sm:$0xff]
        %v518 = vld [vmem:[%s286 + $0x598] sm:$0xff]
        %v519 = vld [vmem:[%s286 + $0x5a0] sm:$0xff]
        %v520 = vld [vmem:[%s286 + $0x5a8] sm:$0xff]
        %v521 = vld [vmem:[%s286 + $0x5b0] sm:$0xff]
        %v522 = vld [vmem:[%s286 + $0x5b8] sm:$0xff]
        %v523 = vld [vmem:[%s286 + $0x5c0] sm:$0xff]
        %v524 = vld [vmem:[%s286 + $0x5c8] sm:$0xff]
        %v525 = vld [vmem:[%s286 + $0x5d0] sm:$0xff]
        %v526 = vld [vmem:[%s286 + $0x5d8] sm:$0xff]
        %v527 = vld [vmem:[%s286 + $0x5e0] sm:$0xff]
        %v528 = vld [vmem:[%s286 + $0x5e8] sm:$0xff]
        %v529 = vld [vmem:[%s286 + $0x5f0] sm:$0xff]
        %v530 = vld [vmem:[%s286 + $0x5f8] sm:$0xff]
        %v531 = vld [vmem:[%s286 + $0x600] sm:$0xff]
        %v532 = vld [vmem:[%s286 + $0x608] sm:$0xff]
        %v533 = vld [vmem:[%s286 + $0x610] sm:$0xff]
        %v534 = vld [vmem:[%s286 + $0x618] sm:$0xff]
        %v535 = vld [vmem:[%s286 + $0x620] sm:$0xff]
        %v536 = vld [vmem:[%s286 + $0x628] sm:$0xff]
        %v537 = vld [vmem:[%s286 + $0x630] sm:$0xff]
        %v538 = vld [vmem:[%s286 + $0x638] sm:$0xff]
        %v539 = vld [vmem:[%s286 + $0x640] sm:$0xff]
        %v540 = vld [vmem:[%s286 + $0x648] sm:$0xff]
        %v541 = vld [vmem:[%s286 + $0x650] sm:$0xff]
        %v542 = vld [vmem:[%s286 + $0x658] sm:$0xff]
        %v543 = vld [vmem:[%s286 + $0x660] sm:$0xff]
        %v544 = vld [vmem:[%s286 + $0x668] sm:$0xff]
        %v545 = vld [vmem:[%s286 + $0x670] sm:$0xff]
        %v546 = vld [vmem:[%s286 + $0x678] sm:$0xff]
        %v547 = vld [vmem:[%s286 + $0x680] sm:$0xff]
        %v548 = vld [vmem:[%s286 + $0x688] sm:$0xff]
        %v549 = vld [vmem:[%s286 + $0x690] sm:$0xff]
        %v550 = vld [vmem:[%s286 + $0x698] sm:$0xff]
        %v551 = vld [vmem:[%s286 + $0x6a0] sm:$0xff]
        %v552 = vld [vmem:[%s286 + $0x6a8] sm:$0xff]
        %v553 = vld [vmem:[%s286 + $0x6b0] sm:$0xff]
        %v554 = vld [vmem:[%s286 + $0x6b8] sm:$0xff]
        %v555 = vld [vmem:[%s286 + $0x6c0] sm:$0xff]
        %v556 = vld [vmem:[%s286 + $0x6c8] sm:$0xff]
        %v557 = vld [vmem:[%s286 + $0x6d0] sm:$0xff]
        %v558 = vld [vmem:[%s286 + $0x6d8] sm:$0xff]
        %v559 = vld [vmem:[%s286 + $0x6e0] sm:$0xff]
        %v560 = vld [vmem:[%s286 + $0x6e8] sm:$0xff]
        %v561 = vld [vmem:[%s286 + $0x6f0] sm:$0xff]
        %v562 = vld [vmem:[%s286 + $0x6f8] sm:$0xff]
        %v563 = vld [vmem:[#allocation5] sm:$0xff]
        %v564 = vld [vmem:[#allocation5 + $0x8] sm:$0xff]
        %v565 = vld [vmem:[#allocation5 + $0x10] sm:$0xff]
        %v566 = vld [vmem:[#allocation5 + $0x18] sm:$0xff]
        %v567 = vld [vmem:[#allocation5 + $0x20] sm:$0xff]
        %v568 = vld [vmem:[#allocation5 + $0x28] sm:$0xff]
        %v569 = vld [vmem:[#allocation5 + $0x30] sm:$0xff]
        %v570 = vld [vmem:[#allocation5 + $0x38] sm:$0xff]
        %v571 = vld [vmem:[#allocation5 + $0x40] sm:$0xff]
        %v572 = vld [vmem:[#allocation5 + $0x48] sm:$0xff]
        %v573 = vld [vmem:[#allocation5 + $0x50] sm:$0xff]
        %v574 = vld [vmem:[#allocation5 + $0x58] sm:$0xff]
        %v575 = vld [vmem:[#allocation5 + $0x60] sm:$0xff]
        %v576 = vld [vmem:[#allocation5 + $0x68] sm:$0xff]
        %v577 = vld [vmem:[#allocation5 + $0x70] sm:$0xff]
        %v578 = vld [vmem:[#allocation5 + $0x78] sm:$0xff]
        %v579 = vld [vmem:[#allocation5 + $0x80] sm:$0xff]
        %v580 = vld [vmem:[#allocation5 + $0x88] sm:$0xff]
        %v581 = vld [vmem:[#allocation5 + $0x90] sm:$0xff]
        %v582 = vld [vmem:[#allocation5 + $0x98] sm:$0xff]
        %v583 = vld [vmem:[#allocation5 + $0xa0] sm:$0xff]
        %v584 = vld [vmem:[#allocation5 + $0xa8] sm:$0xff]
        %v585 = vld [vmem:[#allocation5 + $0xb0] sm:$0xff]
        %v586 = vld [vmem:[#allocation5 + $0xb8] sm:$0xff]
        %v587 = vld [vmem:[#allocation5 + $0xc0] sm:$0xff]
        %v588 = vld [vmem:[#allocation5 + $0xc8] sm:$0xff]
        %v589 = vld [vmem:[#allocation5 + $0xd0] sm:$0xff]
        %v590 = vld [vmem:[#allocation5 + $0xd8] sm:$0xff]
        %v591 = vld [vmem:[#allocation5 + $0xe0] sm:$0xff]
        %v592 = vld [vmem:[#allocation5 + $0xe8] sm:$0xff]
        %v593 = vld [vmem:[#allocation5 + $0xf0] sm:$0xff]
        %v594 = vld [vmem:[#allocation5 + $0xf8] sm:$0xff]
        %v595 = vld [vmem:[#allocation5 + $0x100] sm:$0xff]
        %v596 = vld [vmem:[#allocation5 + $0x108] sm:$0xff]
        %v597 = vld [vmem:[#allocation5 + $0x110] sm:$0xff]
        %v598 = vld [vmem:[#allocation5 + $0x118] sm:$0xff]
        %v599 = vld [vmem:[#allocation5 + $0x120] sm:$0xff]
        %v600 = vld [vmem:[#allocation5 + $0x128] sm:$0xff]
        %v601 = vld [vmem:[#allocation5 + $0x130] sm:$0xff]
        %v602 = vld [vmem:[#allocation5 + $0x138] sm:$0xff]
        %v603 = vld [vmem:[#allocation5 + $0x140] sm:$0xff]
        %v604 = vld [vmem:[#allocation5 + $0x148] sm:$0xff]
        %v605 = vld [vmem:[#allocation5 + $0x150] sm:$0xff]
        %v606 = vld [vmem:[#allocation5 + $0x158] sm:$0xff]
        %v607 = vld [vmem:[#allocation5 + $0x160] sm:$0xff]
        %v608 = vld [vmem:[#allocation5 + $0x168] sm:$0xff]
        %v609 = vld [vmem:[#allocation5 + $0x170] sm:$0xff]
        %v610 = vld [vmem:[#allocation5 + $0x178] sm:$0xff]
        %v611 = vld [vmem:[#allocation5 + $0x180] sm:$0xff]
        %v612 = vld [vmem:[#allocation5 + $0x188] sm:$0xff]
        %v613 = vld [vmem:[#allocation5 + $0x190] sm:$0xff]
        %v614 = vld [vmem:[#allocation5 + $0x198] sm:$0xff]
        %v615 = vld [vmem:[#allocation5 + $0x1a0] sm:$0xff]
        %v616 = vld [vmem:[#allocation5 + $0x1a8] sm:$0xff]
        %v617 = vld [vmem:[#allocation5 + $0x1b0] sm:$0xff]
        %v618 = vld [vmem:[#allocation5 + $0x1b8] sm:$0xff]
        %v619 = vld [vmem:[#allocation5 + $0x1c0] sm:$0xff]
        %v620 = vld [vmem:[#allocation5 + $0x1c8] sm:$0xff]
        %v621 = vld [vmem:[#allocation5 + $0x1d0] sm:$0xff]
        %v622 = vld [vmem:[#allocation5 + $0x1d8] sm:$0xff]
        %v623 = vld [vmem:[#allocation5 + $0x1e0] sm:$0xff]
        %v624 = vld [vmem:[#allocation5 + $0x1e8] sm:$0xff]
        %v625 = vld [vmem:[#allocation5 + $0x1f0] sm:$0xff]
        %v626 = vld [vmem:[#allocation5 + $0x1f8] sm:$0xff]
        %v627 = vld [vmem:[#allocation5 + $0x200] sm:$0xff]
        %v628 = vld [vmem:[#allocation5 + $0x208] sm:$0xff]
        %v629 = vld [vmem:[#allocation5 + $0x210] sm:$0xff]
        %v630 = vld [vmem:[#allocation5 + $0x218] sm:$0xff]
        %v631 = vld [vmem:[#allocation5 + $0x220] sm:$0xff]
        %v632 = vld [vmem:[#allocation5 + $0x228] sm:$0xff]
        %v633 = vld [vmem:[#allocation5 + $0x230] sm:$0xff]
        %v634 = vld [vmem:[#allocation5 + $0x238] sm:$0xff]
        %v635 = vld [vmem:[#allocation5 + $0x240] sm:$0xff]
        %v636 = vld [vmem:[#allocation5 + $0x248] sm:$0xff]
        %v637 = vld [vmem:[#allocation5 + $0x250] sm:$0xff]
        %v638 = vld [vmem:[#allocation5 + $0x258] sm:$0xff]
        %v639 = vld [vmem:[#allocation5 + $0x260] sm:$0xff]
        %v640 = vld [vmem:[#allocation5 + $0x268] sm:$0xff]
        %v641 = vld [vmem:[#allocation5 + $0x270] sm:$0xff]
        %v642 = vld [vmem:[#allocation5 + $0x278] sm:$0xff]
        %v643 = vld [vmem:[#allocation5 + $0x280] sm:$0xff]
        %v644 = vld [vmem:[#allocation5 + $0x288] sm:$0xff]
        %v645 = vld [vmem:[#allocation5 + $0x290] sm:$0xff]
        %v646 = vld [vmem:[#allocation5 + $0x298] sm:$0xff]
        %v647 = vld [vmem:[#allocation5 + $0x2a0] sm:$0xff]
        %v648 = vld [vmem:[#allocation5 + $0x2a8] sm:$0xff]
        %v649 = vld [vmem:[#allocation5 + $0x2b0] sm:$0xff]
        %v650 = vld [vmem:[#allocation5 + $0x2b8] sm:$0xff]
        %v651 = vld [vmem:[#allocation5 + $0x2c0] sm:$0xff]
        %v652 = vld [vmem:[#allocation5 + $0x2c8] sm:$0xff]
        %v653 = vld [vmem:[#allocation5 + $0x2d0] sm:$0xff]
        %v654 = vld [vmem:[#allocation5 + $0x2d8] sm:$0xff]
        %v655 = vld [vmem:[#allocation5 + $0x2e0] sm:$0xff]
        %v656 = vld [vmem:[#allocation5 + $0x2e8] sm:$0xff]
        %v657 = vld [vmem:[#allocation5 + $0x2f0] sm:$0xff]
        %v658 = vld [vmem:[#allocation5 + $0x2f8] sm:$0xff]
        %v659 = vld [vmem:[#allocation5 + $0x300] sm:$0xff]
        %v660 = vld [vmem:[#allocation5 + $0x308] sm:$0xff]
        %v661 = vld [vmem:[#allocation5 + $0x310] sm:$0xff]
        %v662 = vld [vmem:[#allocation5 + $0x318] sm:$0xff]
        %v663 = vld [vmem:[#allocation5 + $0x320] sm:$0xff]
        %v664 = vld [vmem:[#allocation5 + $0x328] sm:$0xff]
        %v665 = vld [vmem:[#allocation5 + $0x330] sm:$0xff]
        %v666 = vld [vmem:[#allocation5 + $0x338] sm:$0xff]
        %v667 = vld [vmem:[#allocation5 + $0x340] sm:$0xff]
        %v668 = vld [vmem:[#allocation5 + $0x348] sm:$0xff]
        %v669 = vld [vmem:[#allocation5 + $0x350] sm:$0xff]
        %v670 = vld [vmem:[#allocation5 + $0x358] sm:$0xff]
        %v671 = vld [vmem:[#allocation5 + $0x360] sm:$0xff]
        %v672 = vld [vmem:[#allocation5 + $0x368] sm:$0xff]
        %v673 = vld [vmem:[#allocation5 + $0x370] sm:$0xff]
        %v674 = vld [vmem:[#allocation5 + $0x378] sm:$0xff]
        %v675 = vld [vmem:[#allocation5 + $0x380] sm:$0xff]
        %v676 = vld [vmem:[#allocation5 + $0x388] sm:$0xff]
        %v677 = vld [vmem:[#allocation5 + $0x390] sm:$0xff]
        %v678 = vld [vmem:[#allocation5 + $0x398] sm:$0xff]
        %v679 = vld [vmem:[#allocation5 + $0x3a0] sm:$0xff]
        %v680 = vld [vmem:[#allocation5 + $0x3a8] sm:$0xff]
        %v681 = vld [vmem:[#allocation5 + $0x3b0] sm:$0xff]
        %v682 = vld [vmem:[#allocation5 + $0x3b8] sm:$0xff]
        %v683 = vld [vmem:[#allocation5 + $0x3c0] sm:$0xff]
        %v684 = vld [vmem:[#allocation5 + $0x3c8] sm:$0xff]
        %v685 = vld [vmem:[#allocation5 + $0x3d0] sm:$0xff]
        %v686 = vld [vmem:[#allocation5 + $0x3d8] sm:$0xff]
        %v687 = vld [vmem:[#allocation5 + $0x3e0] sm:$0xff]
        %v688 = vld [vmem:[#allocation5 + $0x3e8] sm:$0xff]
        %v689 = vld [vmem:[#allocation5 + $0x3f0] sm:$0xff]
        %v690 = vld [vmem:[#allocation5 + $0x3f8] sm:$0xff]
        %v691 = vld [vmem:[#allocation5 + $0x400] sm:$0xff]
        %v692 = vld [vmem:[#allocation5 + $0x408] sm:$0xff]
        %v693 = vld [vmem:[#allocation5 + $0x410] sm:$0xff]
        %v694 = vld [vmem:[#allocation5 + $0x418] sm:$0xff]
        %v695 = vld [vmem:[#allocation5 + $0x420] sm:$0xff]
        %v696 = vld [vmem:[#allocation5 + $0x428] sm:$0xff]
        %v697 = vld [vmem:[#allocation5 + $0x430] sm:$0xff]
        %v698 = vld [vmem:[#allocation5 + $0x438] sm:$0xff]
        %v699 = vld [vmem:[#allocation5 + $0x440] sm:$0xff]
        %v700 = vld [vmem:[#allocation5 + $0x448] sm:$0xff]
        %v701 = vld [vmem:[#allocation5 + $0x450] sm:$0xff]
        %v702 = vld [vmem:[#allocation5 + $0x458] sm:$0xff]
        %v703 = vld [vmem:[#allocation5 + $0x460] sm:$0xff]
        %v704 = vld [vmem:[#allocation5 + $0x468] sm:$0xff]
        %v705 = vld [vmem:[#allocation5 + $0x470] sm:$0xff]
        %v706 = vld [vmem:[#allocation5 + $0x478] sm:$0xff]
        %v707 = vld [vmem:[#allocation5 + $0x480] sm:$0xff]
        %v708 = vld [vmem:[#allocation5 + $0x488] sm:$0xff]
        %v709 = vld [vmem:[#allocation5 + $0x490] sm:$0xff]
        %v710 = vld [vmem:[#allocation5 + $0x498] sm:$0xff]
        %v711 = vld [vmem:[#allocation5 + $0x4a0] sm:$0xff]
        %v712 = vld [vmem:[#allocation5 + $0x4a8] sm:$0xff]
        %v713 = vld [vmem:[#allocation5 + $0x4b0] sm:$0xff]
        %v714 = vld [vmem:[#allocation5 + $0x4b8] sm:$0xff]
        %v715 = vld [vmem:[#allocation5 + $0x4c0] sm:$0xff]
        %v716 = vld [vmem:[#allocation5 + $0x4c8] sm:$0xff]
        %v717 = vld [vmem:[#allocation5 + $0x4d0] sm:$0xff]
        %v718 = vld [vmem:[#allocation5 + $0x4d8] sm:$0xff]
        %v719 = vld [vmem:[#allocation5 + $0x4e0] sm:$0xff]
        %v720 = vld [vmem:[#allocation5 + $0x4e8] sm:$0xff]
        %v721 = vld [vmem:[#allocation5 + $0x4f0] sm:$0xff]
        %v722 = vld [vmem:[#allocation5 + $0x4f8] sm:$0xff]
        %v723 = vld [vmem:[#allocation5 + $0x500] sm:$0xff]
        %v724 = vld [vmem:[#allocation5 + $0x508] sm:$0xff]
        %v725 = vld [vmem:[#allocation5 + $0x510] sm:$0xff]
        %v726 = vld [vmem:[#allocation5 + $0x518] sm:$0xff]
        %v727 = vld [vmem:[#allocation5 + $0x520] sm:$0xff]
        %v728 = vld [vmem:[#allocation5 + $0x528] sm:$0xff]
        %v729 = vld [vmem:[#allocation5 + $0x530] sm:$0xff]
        %v730 = vld [vmem:[#allocation5 + $0x538] sm:$0xff]
        %v731 = vld [vmem:[#allocation5 + $0x540] sm:$0xff]
        %v732 = vld [vmem:[#allocation5 + $0x548] sm:$0xff]
        %v733 = vld [vmem:[#allocation5 + $0x550] sm:$0xff]
        %v734 = vld [vmem:[#allocation5 + $0x558] sm:$0xff]
        %v735 = vld [vmem:[#allocation5 + $0x560] sm:$0xff]
        %v736 = vld [vmem:[#allocation5 + $0x568] sm:$0xff]
        %v737 = vld [vmem:[#allocation5 + $0x570] sm:$0xff]
        %v738 = vld [vmem:[#allocation5 + $0x578] sm:$0xff]
        %v739 = vld [vmem:[#allocation5 + $0x580] sm:$0xff]
        %v740 = vld [vmem:[#allocation5 + $0x588] sm:$0xff]
        %v741 = vld [vmem:[#allocation5 + $0x590] sm:$0xff]
        %v742 = vld [vmem:[#allocation5 + $0x598] sm:$0xff]
        %v743 = vld [vmem:[#allocation5 + $0x5a0] sm:$0xff]
        %v744 = vld [vmem:[#allocation5 + $0x5a8] sm:$0xff]
        %v745 = vld [vmem:[#allocation5 + $0x5b0] sm:$0xff]
        %v746 = vld [vmem:[#allocation5 + $0x5b8] sm:$0xff]
        %v747 = vld [vmem:[#allocation5 + $0x5c0] sm:$0xff]
        %v748 = vld [vmem:[#allocation5 + $0x5c8] sm:$0xff]
        %v749 = vld [vmem:[#allocation5 + $0x5d0] sm:$0xff]
        %v750 = vld [vmem:[#allocation5 + $0x5d8] sm:$0xff]
        %v751 = vld [vmem:[#allocation5 + $0x5e0] sm:$0xff]
        %v752 = vld [vmem:[#allocation5 + $0x5e8] sm:$0xff]
        %v753 = vld [vmem:[#allocation5 + $0x5f0] sm:$0xff]
        %v754 = vld [vmem:[#allocation5 + $0x5f8] sm:$0xff]
        %v755 = vld [vmem:[#allocation5 + $0x600] sm:$0xff]
        %v756 = vld [vmem:[#allocation5 + $0x608] sm:$0xff]
        %v757 = vld [vmem:[#allocation5 + $0x610] sm:$0xff]
        %v758 = vld [vmem:[#allocation5 + $0x618] sm:$0xff]
        %v759 = vld [vmem:[#allocation5 + $0x620] sm:$0xff]
        %v760 = vld [vmem:[#allocation5 + $0x628] sm:$0xff]
        %v761 = vld [vmem:[#allocation5 + $0x630] sm:$0xff]
        %v762 = vld [vmem:[#allocation5 + $0x638] sm:$0xff]
        %v763 = vld [vmem:[#allocation5 + $0x640] sm:$0xff]
        %v764 = vld [vmem:[#allocation5 + $0x648] sm:$0xff]
        %v765 = vld [vmem:[#allocation5 + $0x650] sm:$0xff]
        %v766 = vld [vmem:[#allocation5 + $0x658] sm:$0xff]
        %v767 = vld [vmem:[#allocation5 + $0x660] sm:$0xff]
        %v768 = vld [vmem:[#allocation5 + $0x668] sm:$0xff]
        %v769 = vld [vmem:[#allocation5 + $0x670] sm:$0xff]
        %v770 = vld [vmem:[#allocation5 + $0x678] sm:$0xff]
        %v771 = vld [vmem:[#allocation5 + $0x680] sm:$0xff]
        %v772 = vld [vmem:[#allocation5 + $0x688] sm:$0xff]
        %v773 = vld [vmem:[#allocation5 + $0x690] sm:$0xff]
        %v774 = vld [vmem:[#allocation5 + $0x698] sm:$0xff]
        %v775 = vld [vmem:[#allocation5 + $0x6a0] sm:$0xff]
        %v776 = vld [vmem:[#allocation5 + $0x6a8] sm:$0xff]
        %v777 = vld [vmem:[#allocation5 + $0x6b0] sm:$0xff]
        %v778 = vld [vmem:[#allocation5 + $0x6b8] sm:$0xff]
        %v779 = vld [vmem:[#allocation5 + $0x6c0] sm:$0xff]
        %v780 = vld [vmem:[#allocation5 + $0x6c8] sm:$0xff]
        %v781 = vld [vmem:[#allocation5 + $0x6d0] sm:$0xff]
        %v782 = vld [vmem:[#allocation5 + $0x6d8] sm:$0xff]
        %v783 = vld [vmem:[#allocation5 + $0x6e0] sm:$0xff]
        %v784 = vld [vmem:[#allocation5 + $0x6e8] sm:$0xff]
        %v785 = vld [vmem:[#allocation5 + $0x6f0] sm:$0xff]
        %v786 = vld [vmem:[#allocation5 + $0x6f8] sm:$0xff]
        %v787 = vld [vmem:[#allocation7] sm:$0x1]
        %v789 = vlaneseq
        %v790 = vshrl.u32 %v789, 7
        %v791 = vsub.s32 0, %v790
        %v792 = vrot.slane %v787, %v791
        %794 = vmatprep.subr.mxu0 0.0
        %795 = vmatpush1.msra.mxu0 %v563
        %796 = vmatprep.subr.mxu0 0.0
        %797 = vmatpush1.msra.mxu0 %v564
        %798 = vmatprep.subr.mxu0 0.0
        %799 = vmatpush1.msra.mxu0 %v565
        %800 = vmatprep.subr.mxu0 0.0
        %801 = vmatpush1.msra.mxu0 %v566
        %802 = vmatprep.subr.mxu0 0.0
        %803 = vmatpush1.msra.mxu0 %v567
        %804 = vmatprep.subr.mxu0 0.0
        %805 = vmatpush1.msra.mxu0 %v568
        %806 = vmatprep.subr.mxu0 0.0
        %807 = vmatpush1.msra.mxu0 %v569
        %808 = vmatprep.subr.mxu0 0.0
        %809 = vmatpush1.msra.mxu0 %v570
        %810 = vmatprep.subr.mxu0 0.0
        %811 = vmatpush1.msra.mxu0 %v571
        %812 = vmatprep.subr.mxu0 0.0
        %813 = vmatpush1.msra.mxu0 %v572
        %814 = vmatprep.subr.mxu0 0.0
        %815 = vmatpush1.msra.mxu0 %v573
        %816 = vmatprep.subr.mxu0 0.0
        %817 = vmatpush1.msra.mxu0 %v574
        %818 = vmatprep.subr.mxu0 0.0
        %819 = vmatpush1.msra.mxu0 %v575
        %820 = vmatprep.subr.mxu0 0.0
        %821 = vmatpush1.msra.mxu0 %v576
        %822 = vmatprep.subr.mxu0 0.0
        %823 = vmatpush1.msra.mxu0 %v577
        %824 = vmatprep.subr.mxu0 0.0
        %825 = vmatpush1.msra.mxu0 %v578
        %826 = vmatprep.subr.mxu0 0.0
        %827 = vmatpush1.msra.mxu0 %v579
        %828 = vmatprep.subr.mxu0 0.0
        %829 = vmatpush1.msra.mxu0 %v580
        %830 = vmatprep.subr.mxu0 0.0
        %831 = vmatpush1.msra.mxu0 %v581
        %832 = vmatprep.subr.mxu0 0.0
        %833 = vmatpush1.msra.mxu0 %v582
        %834 = vmatprep.subr.mxu0 0.0
        %835 = vmatpush1.msra.mxu0 %v583
        %836 = vmatprep.subr.mxu0 0.0
        %837 = vmatpush1.msra.mxu0 %v584
        %838 = vmatprep.subr.mxu0 0.0
        %839 = vmatpush1.msra.mxu0 %v585
        %840 = vmatprep.subr.mxu0 0.0
        %841 = vmatpush1.msra.mxu0 %v586
        %842 = vmatprep.subr.mxu0 0.0
        %843 = vmatpush1.msra.mxu0 %v587
        %844 = vmatprep.subr.mxu0 0.0
        %845 = vmatpush1.msra.mxu0 %v588
        %846 = vmatprep.subr.mxu0 0.0
        %847 = vmatpush1.msra.mxu0 %v589
        %848 = vmatprep.subr.mxu0 0.0
        %849 = vmatpush1.msra.mxu0 %v590
        %850 = vmatprep.subr.mxu0 0.0
        %851 = vmatpush1.msra.mxu0 %v591
        %852 = vmatprep.subr.mxu0 0.0
        %853 = vmatpush1.msra.mxu0 %v592
        %854 = vmatprep.subr.mxu0 0.0
        %855 = vmatpush1.msra.mxu0 %v593
        %856 = vmatprep.subr.mxu0 0.0
        %857 = vmatpush1.msra.mxu0 %v594
        %858 = vmatprep.mubr.f32.mxu0 %v340
        %859 = vmatmul.mubr.f32.gmra.mrb[0].mxu0 %v339
        %v860 = vpop.f32.mrb[0].mxu0
        %v861 = vadd.f32 %v792, %v860
        %v862 = vpop.f32.mrb[0].mxu0
        %863 = vmatprep.mubr.f32.mxu0 %v354
        %864 = vmatmul.mubr.f32.gmra.mrb[0].mxu0 %v353
        %v865 = vpop.f32.mrb[0].mxu0
        %v866 = vadd.f32 %v792, %v865
        %v867 = vpop.f32.mrb[0].mxu0
        %868 = vmatprep.mubr.f32.mxu0 %v368
        %869 = vmatmul.mubr.f32.gmra.mrb[0].mxu0 %v367
        %v870 = vpop.f32.mrb[0].mxu0
        %v871 = vadd.f32 %v792, %v870
        %v872 = vpop.f32.mrb[0].mxu0
        %873 = vmatprep.mubr.f32.mxu0 %v382
        %874 = vmatmul.mubr.f32.gmra.mrb[0].mxu0 %v381
        %v875 = vpop.f32.mrb[0].mxu0
        %v876 = vadd.f32 %v792, %v875
        %v877 = vpop.f32.mrb[0].mxu0
        %878 = vmatprep.mubr.f32.mxu0 %v396
        %879 = vmatmul.mubr.f32.gmra.mrb[0].mxu0 %v395
        %v880 = vpop.f32.mrb[0].mxu0
        %v881 = vadd.f32 %v792, %v880
        %v882 = vpop.f32.mrb[0].mxu0
        %883 = vmatprep.mubr.f32.mxu0 %v410
        %884 = vmatmul.mubr.f32.gmra.mrb[0].mxu0 %v409
        %v885 = vpop.f32.mrb[0].mxu0
        %v886 = vadd.f32 %v792, %v885
        %v887 = vpop.f32.mrb[0].mxu0
        %888 = vmatprep.mubr.f32.mxu0 %v424
        %889 = vmatmul.mubr.f32.gmra.mrb[0].mxu0 %v423
        %v890 = vpop.f32.mrb[0].mxu0
        %v891 = vadd.f32 %v792, %v890
        %v892 = vpop.f32.mrb[0].mxu0
        %893 = vmatprep.mubr.f32.mxu0 %v438
        %894 = vmatmul.mubr.f32.gmra.mrb[0].mxu0 %v437
        %v895 = vpop.f32.mrb[0].mxu0
        %v896 = vadd.f32 %v792, %v895
        %v897 = vpop.f32.mrb[0].mxu0
        %898 = vmatprep.mubr.f32.mxu0 %v452
        %899 = vmatmul.mubr.f32.gmra.mrb[0].mxu0 %v451
        %v900 = vpop.f32.mrb[0].mxu0
        %v901 = vadd.f32 %v792, %v900
        %v902 = vpop.f32.mrb[0].mxu0
        %903 = vmatprep.mubr.f32.mxu0 %v466
        %904 = vmatmul.mubr.f32.gmra.mrb[0].mxu0 %v465
        %v905 = vpop.f32.mrb[0].mxu0
        %v906 = vadd.f32 %v792, %v905
        %v907 = vpop.f32.mrb[0].mxu0
        %908 = vmatprep.mubr.f32.mxu0 %v480
        %909 = vmatmul.mubr.f32.gmra.mrb[0].mxu0 %v479
        %v910 = vpop.f32.mrb[0].mxu0
        %v911 = vadd.f32 %v792, %v910
        %v912 = vpop.f32.mrb[0].mxu0
        %913 = vmatprep.mubr.f32.mxu0 %v494
        %914 = vmatmul.mubr.f32.gmra.mrb[0].mxu0 %v493
        %v915 = vpop.f32.mrb[0].mxu0
        %v916 = vadd.f32 %v792, %v915
        %v917 = vpop.f32.mrb[0].mxu0
        %918 = vmatprep.mubr.f32.mxu0 %v508
        %919 = vmatmul.mubr.f32.gmra.mrb[0].mxu0 %v507
        %v920 = vpop.f32.mrb[0].mxu0
        %v921 = vadd.f32 %v792, %v920
        %v922 = vpop.f32.mrb[0].mxu0
        %923 = vmatprep.mubr.f32.mxu0 %v522
        %924 = vmatmul.mubr.f32.gmra.mrb[0].mxu0 %v521
        %v925 = vpop.f32.mrb[0].mxu0
        %v926 = vadd.f32 %v792, %v925
        %v927 = vpop.f32.mrb[0].mxu0
        %928 = vmatprep.mubr.f32.mxu0 %v536
        %929 = vmatmul.mubr.f32.gmra.mrb[0].mxu0 %v535
        %v930 = vpop.f32.mrb[0].mxu0
        %v931 = vadd.f32 %v792, %v930
        %v932 = vpop.f32.mrb[0].mxu0
        %933 = vmatprep.mubr.f32.mxu0 %v550
        %934 = vmatmul.mubr.f32.gmra.mrb[0].mxu0 %v549
        %v935 = vpop.f32.mrb[0].mxu0
        %v936 = vadd.f32 %v792, %v935
        %v937 = vpop.f32.mrb[0].mxu0
        %938 = vdwg.mxu0
        %939 = vmatprep.subr.mxu0 0.0
        %940 = vmatpush1.msra.mxu0 %v595
        %941 = vmatprep.subr.mxu0 0.0
        %942 = vmatpush1.msra.mxu0 %v596
        %943 = vmatprep.subr.mxu0 0.0
        %944 = vmatpush1.msra.mxu0 %v597
        %945 = vmatprep.subr.mxu0 0.0
        %946 = vmatpush1.msra.mxu0 %v598
        %947 = vmatprep.subr.mxu0 0.0
        %948 = vmatpush1.msra.mxu0 %v599
        %949 = vmatprep.subr.mxu0 0.0
        %950 = vmatpush1.msra.mxu0 %v600
        %951 = vmatprep.subr.mxu0 0.0
        %952 = vmatpush1.msra.mxu0 %v601
        %953 = vmatprep.subr.mxu0 0.0
        %954 = vmatpush1.msra.mxu0 %v602
        %955 = vmatprep.subr.mxu0 0.0
        %956 = vmatpush1.msra.mxu0 %v603
        %957 = vmatprep.subr.mxu0 0.0
        %958 = vmatpush1.msra.mxu0 %v604
        %959 = vmatprep.subr.mxu0 0.0
        %960 = vmatpush1.msra.mxu0 %v605
        %961 = vmatprep.subr.mxu0 0.0
        %962 = vmatpush1.msra.mxu0 %v606
        %963 = vmatprep.subr.mxu0 0.0
        %964 = vmatpush1.msra.mxu0 %v607
        %965 = vmatprep.subr.mxu0 0.0
        %966 = vmatpush1.msra.mxu0 %v608
        %967 = vmatprep.subr.mxu0 0.0
        %968 = vmatpush1.msra.mxu0 %v609
        %969 = vmatprep.subr.mxu0 0.0
        %970 = vmatpush1.msra.mxu0 %v610
        %971 = vmatprep.subr.mxu0 0.0
        %972 = vmatpush1.msra.mxu0 %v611
        %973 = vmatprep.subr.mxu0 0.0
        %974 = vmatpush1.msra.mxu0 %v612
        %975 = vmatprep.subr.mxu0 0.0
        %976 = vmatpush1.msra.mxu0 %v613
        %977 = vmatprep.subr.mxu0 0.0
        %978 = vmatpush1.msra.mxu0 %v614
        %979 = vmatprep.subr.mxu0 0.0
        %980 = vmatpush1.msra.mxu0 %v615
        %981 = vmatprep.subr.mxu0 0.0
        %982 = vmatpush1.msra.mxu0 %v616
        %983 = vmatprep.subr.mxu0 0.0
        %984 = vmatpush1.msra.mxu0 %v617
        %985 = vmatprep.subr.mxu0 0.0
        %986 = vmatpush1.msra.mxu0 %v618
        %987 = vmatprep.subr.mxu0 0.0
        %988 = vmatpush1.msra.mxu0 %v619
        %989 = vmatprep.subr.mxu0 0.0
        %990 = vmatpush1.msra.mxu0 %v620
        %991 = vmatprep.subr.mxu0 0.0
        %992 = vmatpush1.msra.mxu0 %v621
        %993 = vmatprep.subr.mxu0 0.0
        %994 = vmatpush1.msra.mxu0 %v622
        %995 = vmatprep.subr.mxu0 0.0
        %996 = vmatpush1.msra.mxu0 %v623
        %997 = vmatprep.subr.mxu0 0.0
        %998 = vmatpush1.msra.mxu0 %v624
        %999 = vmatprep.subr.mxu0 0.0
        %1000 = vmatpush1.msra.mxu0 %v625
        %1001 = vmatprep.subr.mxu0 0.0
        %1002 = vmatpush1.msra.mxu0 %v626
        %1003 = vmatprep.mubr.f32.mxu0 %v342
        %1004 = vmatmul.mubr.f32.gmra.mrb[0].mxu0 %v341
        %v1005 = vpop.f32.mrb[0].mxu0
        %v1006 = vadd.f32 %v861, %v1005
        %v1007 = vpop.f32.mrb[0].mxu0
        %1008 = vmatprep.mubr.f32.mxu0 %v356
        %1009 = vmatmul.mubr.f32.gmra.mrb[0].mxu0 %v355
        %v1010 = vpop.f32.mrb[0].mxu0
        %v1011 = vadd.f32 %v866, %v1010
        %v1012 = vpop.f32.mrb[0].mxu0
        %1013 = vmatprep.mubr.f32.mxu0 %v370
        %1014 = vmatmul.mubr.f32.gmra.mrb[0].mxu0 %v369
        %v1015 = vpop.f32.mrb[0].mxu0
        %v1016 = vadd.f32 %v871, %v1015
        %v1017 = vpop.f32.mrb[0].mxu0
        %1018 = vmatprep.mubr.f32.mxu0 %v384
        %1019 = vmatmul.mubr.f32.gmra.mrb[0].mxu0 %v383
        %v1020 = vpop.f32.mrb[0].mxu0
        %v1021 = vadd.f32 %v876, %v1020
        %v1022 = vpop.f32.mrb[0].mxu0
        %1023 = vmatprep.mubr.f32.mxu0 %v398
        %1024 = vmatmul.mubr.f32.gmra.mrb[0].mxu0 %v397
        %v1025 = vpop.f32.mrb[0].mxu0
        %v1026 = vadd.f32 %v881, %v1025
        %v1027 = vpop.f32.mrb[0].mxu0
        %1028 = vmatprep.mubr.f32.mxu0 %v412
        %1029 = vmatmul.mubr.f32.gmra.mrb[0].mxu0 %v411
        %v1030 = vpop.f32.mrb[0].mxu0
        %v1031 = vadd.f32 %v886, %v1030
        %v1032 = vpop.f32.mrb[0].mxu0
        %1033 = vmatprep.mubr.f32.mxu0 %v426
        %1034 = vmatmul.mubr.f32.gmra.mrb[0].mxu0 %v425
        %v1035 = vpop.f32.mrb[0].mxu0
        %v1036 = vadd.f32 %v891, %v1035
        %v1037 = vpop.f32.mrb[0].mxu0
        %1038 = vmatprep.mubr.f32.mxu0 %v440
        %1039 = vmatmul.mubr.f32.gmra.mrb[0].mxu0 %v439
        %v1040 = vpop.f32.mrb[0].mxu0
        %v1041 = vadd.f32 %v896, %v1040
        %v1042 = vpop.f32.mrb[0].mxu0
        %1043 = vmatprep.mubr.f32.mxu0 %v454
        %1044 = vmatmul.mubr.f32.gmra.mrb[0].mxu0 %v453
        %v1045 = vpop.f32.mrb[0].mxu0
        %v1046 = vadd.f32 %v901, %v1045
        %v1047 = vpop.f32.mrb[0].mxu0
        %1048 = vmatprep.mubr.f32.mxu0 %v468
        %1049 = vmatmul.mubr.f32.gmra.mrb[0].mxu0 %v467
        %v1050 = vpop.f32.mrb[0].mxu0
        %v1051 = vadd.f32 %v906, %v1050
        %v1052 = vpop.f32.mrb[0].mxu0
        %1053 = vmatprep.mubr.f32.mxu0 %v482
        %1054 = vmatmul.mubr.f32.gmra.mrb[0].mxu0 %v481
        %v1055 = vpop.f32.mrb[0].mxu0
        %v1056 = vadd.f32 %v911, %v1055
        %v1057 = vpop.f32.mrb[0].mxu0
        %1058 = vmatprep.mubr.f32.mxu0 %v496
        %1059 = vmatmul.mubr.f32.gmra.mrb[0].mxu0 %v495
        %v1060 = vpop.f32.mrb[0].mxu0
        %v1061 = vadd.f32 %v916, %v1060
        %v1062 = vpop.f32.mrb[0].mxu0
        %1063 = vmatprep.mubr.f32.mxu0 %v510
        %1064 = vmatmul.mubr.f32.gmra.mrb[0].mxu0 %v509
        %v1065 = vpop.f32.mrb[0].mxu0
        %v1066 = vadd.f32 %v921, %v1065
        %v1067 = vpop.f32.mrb[0].mxu0
        %1068 = vmatprep.mubr.f32.mxu0 %v524
        %1069 = vmatmul.mubr.f32.gmra.mrb[0].mxu0 %v523
        %v1070 = vpop.f32.mrb[0].mxu0
        %v1071 = vadd.f32 %v926, %v1070
        %v1072 = vpop.f32.mrb[0].mxu0
        %1073 = vmatprep.mubr.f32.mxu0 %v538
        %1074 = vmatmul.mubr.f32.gmra.mrb[0].mxu0 %v537
        %v1075 = vpop.f32.mrb[0].mxu0
        %v1076 = vadd.f32 %v931, %v1075
        %v1077 = vpop.f32.mrb[0].mxu0
        %1078 = vmatprep.mubr.f32.mxu0 %v552
        %1079 = vmatmul.mubr.f32.gmra.mrb[0].mxu0 %v551
        %v1080 = vpop.f32.mrb[0].mxu0
        %v1081 = vadd.f32 %v936, %v1080
        %v1082 = vpop.f32.mrb[0].mxu0
        %1083 = vdwg.mxu0
        %1084 = vmatprep.subr.mxu0 0.0
        %1085 = vmatpush1.msra.mxu0 %v627
        %1086 = vmatprep.subr.mxu0 0.0
        %1087 = vmatpush1.msra.mxu0 %v628
        %1088 = vmatprep.subr.mxu0 0.0
        %1089 = vmatpush1.msra.mxu0 %v629
        %1090 = vmatprep.subr.mxu0 0.0
        %1091 = vmatpush1.msra.mxu0 %v630
        %1092 = vmatprep.subr.mxu0 0.0
        %1093 = vmatpush1.msra.mxu0 %v631
        %1094 = vmatprep.subr.mxu0 0.0
        %1095 = vmatpush1.msra.mxu0 %v632
        %1096 = vmatprep.subr.mxu0 0.0
        %1097 = vmatpush1.msra.mxu0 %v633
        %1098 = vmatprep.subr.mxu0 0.0
        %1099 = vmatpush1.msra.mxu0 %v634
        %1100 = vmatprep.subr.mxu0 0.0
        %1101 = vmatpush1.msra.mxu0 %v635
        %1102 = vmatprep.subr.mxu0 0.0
        %1103 = vmatpush1.msra.mxu0 %v636
        %1104 = vmatprep.subr.mxu0 0.0
        %1105 = vmatpush1.msra.mxu0 %v637
        %1106 = vmatprep.subr.mxu0 0.0
        %1107 = vmatpush1.msra.mxu0 %v638
        %1108 = vmatprep.subr.mxu0 0.0
        %1109 = vmatpush1.msra.mxu0 %v639
        %1110 = vmatprep.subr.mxu0 0.0
        %1111 = vmatpush1.msra.mxu0 %v640
        %1112 = vmatprep.subr.mxu0 0.0
        %1113 = vmatpush1.msra.mxu0 %v641
        %1114 = vmatprep.subr.mxu0 0.0
        %1115 = vmatpush1.msra.mxu0 %v642
        %1116 = vmatprep.subr.mxu0 0.0
        %1117 = vmatpush1.msra.mxu0 %v643
        %1118 = vmatprep.subr.mxu0 0.0
        %1119 = vmatpush1.msra.mxu0 %v644
        %1120 = vmatprep.subr.mxu0 0.0
        %1121 = vmatpush1.msra.mxu0 %v645
        %1122 = vmatprep.subr.mxu0 0.0
        %1123 = vmatpush1.msra.mxu0 %v646
        %1124 = vmatprep.subr.mxu0 0.0
        %1125 = vmatpush1.msra.mxu0 %v647
        %1126 = vmatprep.subr.mxu0 0.0
        %1127 = vmatpush1.msra.mxu0 %v648
        %1128 = vmatprep.subr.mxu0 0.0
        %1129 = vmatpush1.msra.mxu0 %v649
        %1130 = vmatprep.subr.mxu0 0.0
        %1131 = vmatpush1.msra.mxu0 %v650
        %1132 = vmatprep.subr.mxu0 0.0
        %1133 = vmatpush1.msra.mxu0 %v651
        %1134 = vmatprep.subr.mxu0 0.0
        %1135 = vmatpush1.msra.mxu0 %v652
        %1136 = vmatprep.subr.mxu0 0.0
        %1137 = vmatpush1.msra.mxu0 %v653
        %1138 = vmatprep.subr.mxu0 0.0
        %1139 = vmatpush1.msra.mxu0 %v654
        %1140 = vmatprep.subr.mxu0 0.0
        %1141 = vmatpush1.msra.mxu0 %v655
        %1142 = vmatprep.subr.mxu0 0.0
        %1143 = vmatpush1.msra.mxu0 %v656
        %1144 = vmatprep.subr.mxu0 0.0
        %1145 = vmatpush1.msra.mxu0 %v657
        %1146 = vmatprep.subr.mxu0 0.0
        %1147 = vmatpush1.msra.mxu0 %v658
        %1148 = vmatprep.mubr.f32.mxu0 %v344
        %1149 = vmatmul.mubr.f32.gmra.mrb[0].mxu0 %v343
        %v1150 = vpop.f32.mrb[0].mxu0
        %v1151 = vadd.f32 %v1006, %v1150
        %v1152 = vpop.f32.mrb[0].mxu0
        %1153 = vmatprep.mubr.f32.mxu0 %v358
        %1154 = vmatmul.mubr.f32.gmra.mrb[0].mxu0 %v357
        %v1155 = vpop.f32.mrb[0].mxu0
        %v1156 = vadd.f32 %v1011, %v1155
        %v1157 = vpop.f32.mrb[0].mxu0
        %1158 = vmatprep.mubr.f32.mxu0 %v372
        %1159 = vmatmul.mubr.f32.gmra.mrb[0].mxu0 %v371
        %v1160 = vpop.f32.mrb[0].mxu0
        %v1161 = vadd.f32 %v1016, %v1160
        %v1162 = vpop.f32.mrb[0].mxu0
        %1163 = vmatprep.mubr.f32.mxu0 %v386
        %1164 = vmatmul.mubr.f32.gmra.mrb[0].mxu0 %v385
        %v1165 = vpop.f32.mrb[0].mxu0
        %v1166 = vadd.f32 %v1021, %v1165
        %v1167 = vpop.f32.mrb[0].mxu0
        %1168 = vmatprep.mubr.f32.mxu0 %v400
        %1169 = vmatmul.mubr.f32.gmra.mrb[0].mxu0 %v399
        %v1170 = vpop.f32.mrb[0].mxu0
        %v1171 = vadd.f32 %v1026, %v1170
        %v1172 = vpop.f32.mrb[0].mxu0
        %1173 = vmatprep.mubr.f32.mxu0 %v414
        %1174 = vmatmul.mubr.f32.gmra.mrb[0].mxu0 %v413
        %v1175 = vpop.f32.mrb[0].mxu0
        %v1176 = vadd.f32 %v1031, %v1175
        %v1177 = vpop.f32.mrb[0].mxu0
        %1178 = vmatprep.mubr.f32.mxu0 %v428
        %1179 = vmatmul.mubr.f32.gmra.mrb[0].mxu0 %v427
        %v1180 = vpop.f32.mrb[0].mxu0
        %v1181 = vadd.f32 %v1036, %v1180
        %v1182 = vpop.f32.mrb[0].mxu0
        %1183 = vmatprep.mubr.f32.mxu0 %v442
        %1184 = vmatmul.mubr.f32.gmra.mrb[0].mxu0 %v441
        %v1185 = vpop.f32.mrb[0].mxu0
        %v1186 = vadd.f32 %v1041, %v1185
        %v1187 = vpop.f32.mrb[0].mxu0
        %1188 = vmatprep.mubr.f32.mxu0 %v456
        %1189 = vmatmul.mubr.f32.gmra.mrb[0].mxu0 %v455
        %v1190 = vpop.f32.mrb[0].mxu0
        %v1191 = vadd.f32 %v1046, %v1190
        %v1192 = vpop.f32.mrb[0].mxu0
        %1193 = vmatprep.mubr.f32.mxu0 %v470
        %1194 = vmatmul.mubr.f32.gmra.mrb[0].mxu0 %v469
        %v1195 = vpop.f32.mrb[0].mxu0
        %v1196 = vadd.f32 %v1051, %v1195
        %v1197 = vpop.f32.mrb[0].mxu0
        %1198 = vmatprep.mubr.f32.mxu0 %v484
        %1199 = vmatmul.mubr.f32.gmra.mrb[0].mxu0 %v483
        %v1200 = vpop.f32.mrb[0].mxu0
        %v1201 = vadd.f32 %v1056, %v1200
        %v1202 = vpop.f32.mrb[0].mxu0
        %1203 = vmatprep.mubr.f32.mxu0 %v498
        %1204 = vmatmul.mubr.f32.gmra.mrb[0].mxu0 %v497
        %v1205 = vpop.f32.mrb[0].mxu0
        %v1206 = vadd.f32 %v1061, %v1205
        %v1207 = vpop.f32.mrb[0].mxu0
        %1208 = vmatprep.mubr.f32.mxu0 %v512
        %1209 = vmatmul.mubr.f32.gmra.mrb[0].mxu0 %v511
        %v1210 = vpop.f32.mrb[0].mxu0
        %v1211 = vadd.f32 %v1066, %v1210
        %v1212 = vpop.f32.mrb[0].mxu0
        %1213 = vmatprep.mubr.f32.mxu0 %v526
        %1214 = vmatmul.mubr.f32.gmra.mrb[0].mxu0 %v525
        %v1215 = vpop.f32.mrb[0].mxu0
        %v1216 = vadd.f32 %v1071, %v1215
        %v1217 = vpop.f32.mrb[0].mxu0
        %1218 = vmatprep.mubr.f32.mxu0 %v540
        %1219 = vmatmul.mubr.f32.gmra.mrb[0].mxu0 %v539
        %v1220 = vpop.f32.mrb[0].mxu0
        %v1221 = vadd.f32 %v1076, %v1220
        %v1222 = vpop.f32.mrb[0].mxu0
        %1223 = vmatprep.mubr.f32.mxu0 %v554
        %1224 = vmatmul.mubr.f32.gmra.mrb[0].mxu0 %v553
        %v1225 = vpop.f32.mrb[0].mxu0
        %v1226 = vadd.f32 %v1081, %v1225
        %v1227 = vpop.f32.mrb[0].mxu0
        %1228 = vdwg.mxu0
        %1229 = vmatprep.subr.mxu0 0.0
        %1230 = vmatpush1.msra.mxu0 %v659
        %1231 = vmatprep.subr.mxu0 0.0
        %1232 = vmatpush1.msra.mxu0 %v660
        %1233 = vmatprep.subr.mxu0 0.0
        %1234 = vmatpush1.msra.mxu0 %v661
        %1235 = vmatprep.subr.mxu0 0.0
        %1236 = vmatpush1.msra.mxu0 %v662
        %1237 = vmatprep.subr.mxu0 0.0
        %1238 = vmatpush1.msra.mxu0 %v663
        %1239 = vmatprep.subr.mxu0 0.0
        %1240 = vmatpush1.msra.mxu0 %v664
        %1241 = vmatprep.subr.mxu0 0.0
        %1242 = vmatpush1.msra.mxu0 %v665
        %1243 = vmatprep.subr.mxu0 0.0
        %1244 = vmatpush1.msra.mxu0 %v666
        %1245 = vmatprep.subr.mxu0 0.0
        %1246 = vmatpush1.msra.mxu0 %v667
        %1247 = vmatprep.subr.mxu0 0.0
        %1248 = vmatpush1.msra.mxu0 %v668
        %1249 = vmatprep.subr.mxu0 0.0
        %1250 = vmatpush1.msra.mxu0 %v669
        %1251 = vmatprep.subr.mxu0 0.0
        %1252 = vmatpush1.msra.mxu0 %v670
        %1253 = vmatprep.subr.mxu0 0.0
        %1254 = vmatpush1.msra.mxu0 %v671
        %1255 = vmatprep.subr.mxu0 0.0
        %1256 = vmatpush1.msra.mxu0 %v672
        %1257 = vmatprep.subr.mxu0 0.0
        %1258 = vmatpush1.msra.mxu0 %v673
        %1259 = vmatprep.subr.mxu0 0.0
        %1260 = vmatpush1.msra.mxu0 %v674
        %1261 = vmatprep.subr.mxu0 0.0
        %1262 = vmatpush1.msra.mxu0 %v675
        %1263 = vmatprep.subr.mxu0 0.0
        %1264 = vmatpush1.msra.mxu0 %v676
        %1265 = vmatprep.subr.mxu0 0.0
        %1266 = vmatpush1.msra.mxu0 %v677
        %1267 = vmatprep.subr.mxu0 0.0
        %1268 = vmatpush1.msra.mxu0 %v678
        %1269 = vmatprep.subr.mxu0 0.0
        %1270 = vmatpush1.msra.mxu0 %v679
        %1271 = vmatprep.subr.mxu0 0.0
        %1272 = vmatpush1.msra.mxu0 %v680
        %1273 = vmatprep.subr.mxu0 0.0
        %1274 = vmatpush1.msra.mxu0 %v681
        %1275 = vmatprep.subr.mxu0 0.0
        %1276 = vmatpush1.msra.mxu0 %v682
        %1277 = vmatprep.subr.mxu0 0.0
        %1278 = vmatpush1.msra.mxu0 %v683
        %1279 = vmatprep.subr.mxu0 0.0
        %1280 = vmatpush1.msra.mxu0 %v684
        %1281 = vmatprep.subr.mxu0 0.0
        %1282 = vmatpush1.msra.mxu0 %v685
        %1283 = vmatprep.subr.mxu0 0.0
        %1284 = vmatpush1.msra.mxu0 %v686
        %1285 = vmatprep.subr.mxu0 0.0
        %1286 = vmatpush1.msra.mxu0 %v687
        %1287 = vmatprep.subr.mxu0 0.0
        %1288 = vmatpush1.msra.mxu0 %v688
        %1289 = vmatprep.subr.mxu0 0.0
        %1290 = vmatpush1.msra.mxu0 %v689
        %1291 = vmatprep.subr.mxu0 0.0
        %1292 = vmatpush1.msra.mxu0 %v690
        %1293 = vmatprep.mubr.f32.mxu0 %v346
        %1294 = vmatmul.mubr.f32.gmra.mrb[0].mxu0 %v345
        %v1295 = vpop.f32.mrb[0].mxu0
        %v1296 = vadd.f32 %v1151, %v1295
        %v1297 = vpop.f32.mrb[0].mxu0
        %1298 = vmatprep.mubr.f32.mxu0 %v360
        %1299 = vmatmul.mubr.f32.gmra.mrb[0].mxu0 %v359
        %v1300 = vpop.f32.mrb[0].mxu0
        %v1301 = vadd.f32 %v1156, %v1300
        %v1302 = vpop.f32.mrb[0].mxu0
        %1303 = vmatprep.mubr.f32.mxu0 %v374
        %1304 = vmatmul.mubr.f32.gmra.mrb[0].mxu0 %v373
        %v1305 = vpop.f32.mrb[0].mxu0
        %v1306 = vadd.f32 %v1161, %v1305
        %v1307 = vpop.f32.mrb[0].mxu0
        %1308 = vmatprep.mubr.f32.mxu0 %v388
        %1309 = vmatmul.mubr.f32.gmra.mrb[0].mxu0 %v387
        %v1310 = vpop.f32.mrb[0].mxu0
        %v1311 = vadd.f32 %v1166, %v1310
        %v1312 = vpop.f32.mrb[0].mxu0
        %1313 = vmatprep.mubr.f32.mxu0 %v402
        %1314 = vmatmul.mubr.f32.gmra.mrb[0].mxu0 %v401
        %v1315 = vpop.f32.mrb[0].mxu0
        %v1316 = vadd.f32 %v1171, %v1315
        %v1317 = vpop.f32.mrb[0].mxu0
        %1318 = vmatprep.mubr.f32.mxu0 %v416
        %1319 = vmatmul.mubr.f32.gmra.mrb[0].mxu0 %v415
        %v1320 = vpop.f32.mrb[0].mxu0
        %v1321 = vadd.f32 %v1176, %v1320
        %v1322 = vpop.f32.mrb[0].mxu0
        %1323 = vmatprep.mubr.f32.mxu0 %v430
        %1324 = vmatmul.mubr.f32.gmra.mrb[0].mxu0 %v429
        %v1325 = vpop.f32.mrb[0].mxu0
        %v1326 = vadd.f32 %v1181, %v1325
        %v1327 = vpop.f32.mrb[0].mxu0
        %1328 = vmatprep.mubr.f32.mxu0 %v444
        %1329 = vmatmul.mubr.f32.gmra.mrb[0].mxu0 %v443
        %v1330 = vpop.f32.mrb[0].mxu0
        %v1331 = vadd.f32 %v1186, %v1330
        %v1332 = vpop.f32.mrb[0].mxu0
        %1333 = vmatprep.mubr.f32.mxu0 %v458
        %1334 = vmatmul.mubr.f32.gmra.mrb[0].mxu0 %v457
        %v1335 = vpop.f32.mrb[0].mxu0
        %v1336 = vadd.f32 %v1191, %v1335
        %v1337 = vpop.f32.mrb[0].mxu0
        %1338 = vmatprep.mubr.f32.mxu0 %v472
        %1339 = vmatmul.mubr.f32.gmra.mrb[0].mxu0 %v471
        %v1340 = vpop.f32.mrb[0].mxu0
        %v1341 = vadd.f32 %v1196, %v1340
        %v1342 = vpop.f32.mrb[0].mxu0
        %1343 = vmatprep.mubr.f32.mxu0 %v486
        %1344 = vmatmul.mubr.f32.gmra.mrb[0].mxu0 %v485
        %v1345 = vpop.f32.mrb[0].mxu0
        %v1346 = vadd.f32 %v1201, %v1345
        %v1347 = vpop.f32.mrb[0].mxu0
        %1348 = vmatprep.mubr.f32.mxu0 %v500
        %1349 = vmatmul.mubr.f32.gmra.mrb[0].mxu0 %v499
        %v1350 = vpop.f32.mrb[0].mxu0
        %v1351 = vadd.f32 %v1206, %v1350
        %v1352 = vpop.f32.mrb[0].mxu0
        %1353 = vmatprep.mubr.f32.mxu0 %v514
        %1354 = vmatmul.mubr.f32.gmra.mrb[0].mxu0 %v513
        %v1355 = vpop.f32.mrb[0].mxu0
        %v1356 = vadd.f32 %v1211, %v1355
        %v1357 = vpop.f32.mrb[0].mxu0
        %1358 = vmatprep.mubr.f32.mxu0 %v528
        %1359 = vmatmul.mubr.f32.gmra.mrb[0].mxu0 %v527
        %v1360 = vpop.f32.mrb[0].mxu0
        %v1361 = vadd.f32 %v1216, %v1360
        %v1362 = vpop.f32.mrb[0].mxu0
        %1363 = vmatprep.mubr.f32.mxu0 %v542
        %1364 = vmatmul.mubr.f32.gmra.mrb[0].mxu0 %v541
        %v1365 = vpop.f32.mrb[0].mxu0
        %v1366 = vadd.f32 %v1221, %v1365
        %v1367 = vpop.f32.mrb[0].mxu0
        %1368 = vmatprep.mubr.f32.mxu0 %v556
        %1369 = vmatmul.mubr.f32.gmra.mrb[0].mxu0 %v555
        %v1370 = vpop.f32.mrb[0].mxu0
        %v1371 = vadd.f32 %v1226, %v1370
        %v1372 = vpop.f32.mrb[0].mxu0
        %1373 = vdwg.mxu0
        %1374 = vmatprep.subr.mxu0 0.0
        %1375 = vmatpush1.msra.mxu0 %v691
        %1376 = vmatprep.subr.mxu0 0.0
        %1377 = vmatpush1.msra.mxu0 %v692
        %1378 = vmatprep.subr.mxu0 0.0
        %1379 = vmatpush1.msra.mxu0 %v693
        %1380 = vmatprep.subr.mxu0 0.0
        %1381 = vmatpush1.msra.mxu0 %v694
        %1382 = vmatprep.subr.mxu0 0.0
        %1383 = vmatpush1.msra.mxu0 %v695
        %1384 = vmatprep.subr.mxu0 0.0
        %1385 = vmatpush1.msra.mxu0 %v696
        %1386 = vmatprep.subr.mxu0 0.0
        %1387 = vmatpush1.msra.mxu0 %v697
        %1388 = vmatprep.subr.mxu0 0.0
        %1389 = vmatpush1.msra.mxu0 %v698
        %1390 = vmatprep.subr.mxu0 0.0
        %1391 = vmatpush1.msra.mxu0 %v699
        %1392 = vmatprep.subr.mxu0 0.0
        %1393 = vmatpush1.msra.mxu0 %v700
        %1394 = vmatprep.subr.mxu0 0.0
        %1395 = vmatpush1.msra.mxu0 %v701
        %1396 = vmatprep.subr.mxu0 0.0
        %1397 = vmatpush1.msra.mxu0 %v702
        %1398 = vmatprep.subr.mxu0 0.0
        %1399 = vmatpush1.msra.mxu0 %v703
        %1400 = vmatprep.subr.mxu0 0.0
        %1401 = vmatpush1.msra.mxu0 %v704
        %1402 = vmatprep.subr.mxu0 0.0
        %1403 = vmatpush1.msra.mxu0 %v705
        %1404 = vmatprep.subr.mxu0 0.0
        %1405 = vmatpush1.msra.mxu0 %v706
        %1406 = vmatprep.subr.mxu0 0.0
        %1407 = vmatpush1.msra.mxu0 %v707
        %1408 = vmatprep.subr.mxu0 0.0
        %1409 = vmatpush1.msra.mxu0 %v708
        %1410 = vmatprep.subr.mxu0 0.0
        %1411 = vmatpush1.msra.mxu0 %v709
        %1412 = vmatprep.subr.mxu0 0.0
        %1413 = vmatpush1.msra.mxu0 %v710
        %1414 = vmatprep.subr.mxu0 0.0
        %1415 = vmatpush1.msra.mxu0 %v711
        %1416 = vmatprep.subr.mxu0 0.0
        %1417 = vmatpush1.msra.mxu0 %v712
        %1418 = vmatprep.subr.mxu0 0.0
        %1419 = vmatpush1.msra.mxu0 %v713
        %1420 = vmatprep.subr.mxu0 0.0
        %1421 = vmatpush1.msra.mxu0 %v714
        %1422 = vmatprep.subr.mxu0 0.0
        %1423 = vmatpush1.msra.mxu0 %v715
        %1424 = vmatprep.subr.mxu0 0.0
        %1425 = vmatpush1.msra.mxu0 %v716
        %1426 = vmatprep.subr.mxu0 0.0
        %1427 = vmatpush1.msra.mxu0 %v717
        %1428 = vmatprep.subr.mxu0 0.0
        %1429 = vmatpush1.msra.mxu0 %v718
        %1430 = vmatprep.subr.mxu0 0.0
        %1431 = vmatpush1.msra.mxu0 %v719
        %1432 = vmatprep.subr.mxu0 0.0
        %1433 = vmatpush1.msra.mxu0 %v720
        %1434 = vmatprep.subr.mxu0 0.0
        %1435 = vmatpush1.msra.mxu0 %v721
        %1436 = vmatprep.subr.mxu0 0.0
        %1437 = vmatpush1.msra.mxu0 %v722
        %1438 = vmatprep.mubr.f32.mxu0 %v348
        %1439 = vmatmul.mubr.f32.gmra.mrb[0].mxu0 %v347
        %v1440 = vpop.f32.mrb[0].mxu0
        %v1441 = vadd.f32 %v1296, %v1440
        %v1442 = vpop.f32.mrb[0].mxu0
        %1443 = vmatprep.mubr.f32.mxu0 %v362
        %1444 = vmatmul.mubr.f32.gmra.mrb[0].mxu0 %v361
        %v1445 = vpop.f32.mrb[0].mxu0
        %v1446 = vadd.f32 %v1301, %v1445
        %v1447 = vpop.f32.mrb[0].mxu0
        %1448 = vmatprep.mubr.f32.mxu0 %v376
        %1449 = vmatmul.mubr.f32.gmra.mrb[0].mxu0 %v375
        %v1450 = vpop.f32.mrb[0].mxu0
        %v1451 = vadd.f32 %v1306, %v1450
        %v1452 = vpop.f32.mrb[0].mxu0
        %1453 = vmatprep.mubr.f32.mxu0 %v390
        %1454 = vmatmul.mubr.f32.gmra.mrb[0].mxu0 %v389
        %v1455 = vpop.f32.mrb[0].mxu0
        %v1456 = vadd.f32 %v1311, %v1455
        %v1457 = vpop.f32.mrb[0].mxu0
        %1458 = vmatprep.mubr.f32.mxu0 %v404
        %1459 = vmatmul.mubr.f32.gmra.mrb[0].mxu0 %v403
        %v1460 = vpop.f32.mrb[0].mxu0
        %v1461 = vadd.f32 %v1316, %v1460
        %v1462 = vpop.f32.mrb[0].mxu0
        %1463 = vmatprep.mubr.f32.mxu0 %v418
        %1464 = vmatmul.mubr.f32.gmra.mrb[0].mxu0 %v417
        %v1465 = vpop.f32.mrb[0].mxu0
        %v1466 = vadd.f32 %v1321, %v1465
        %v1467 = vpop.f32.mrb[0].mxu0
        %1468 = vmatprep.mubr.f32.mxu0 %v432
        %1469 = vmatmul.mubr.f32.gmra.mrb[0].mxu0 %v431
        %v1470 = vpop.f32.mrb[0].mxu0
        %v1471 = vadd.f32 %v1326, %v1470
        %v1472 = vpop.f32.mrb[0].mxu0
        %1473 = vmatprep.mubr.f32.mxu0 %v446
        %1474 = vmatmul.mubr.f32.gmra.mrb[0].mxu0 %v445
        %v1475 = vpop.f32.mrb[0].mxu0
        %v1476 = vadd.f32 %v1331, %v1475
        %v1477 = vpop.f32.mrb[0].mxu0
        %1478 = vmatprep.mubr.f32.mxu0 %v460
        %1479 = vmatmul.mubr.f32.gmra.mrb[0].mxu0 %v459
        %v1480 = vpop.f32.mrb[0].mxu0
        %v1481 = vadd.f32 %v1336, %v1480
        %v1482 = vpop.f32.mrb[0].mxu0
        %1483 = vmatprep.mubr.f32.mxu0 %v474
        %1484 = vmatmul.mubr.f32.gmra.mrb[0].mxu0 %v473
        %v1485 = vpop.f32.mrb[0].mxu0
        %v1486 = vadd.f32 %v1341, %v1485
        %v1487 = vpop.f32.mrb[0].mxu0
        %1488 = vmatprep.mubr.f32.mxu0 %v488
        %1489 = vmatmul.mubr.f32.gmra.mrb[0].mxu0 %v487
        %v1490 = vpop.f32.mrb[0].mxu0
        %v1491 = vadd.f32 %v1346, %v1490
        %v1492 = vpop.f32.mrb[0].mxu0
        %1493 = vmatprep.mubr.f32.mxu0 %v502
        %1494 = vmatmul.mubr.f32.gmra.mrb[0].mxu0 %v501
        %v1495 = vpop.f32.mrb[0].mxu0
        %v1496 = vadd.f32 %v1351, %v1495
        %v1497 = vpop.f32.mrb[0].mxu0
        %1498 = vmatprep.mubr.f32.mxu0 %v516
        %1499 = vmatmul.mubr.f32.gmra.mrb[0].mxu0 %v515
        %v1500 = vpop.f32.mrb[0].mxu0
        %v1501 = vadd.f32 %v1356, %v1500
        %v1502 = vpop.f32.mrb[0].mxu0
        %1503 = vmatprep.mubr.f32.mxu0 %v530
        %1504 = vmatmul.mubr.f32.gmra.mrb[0].mxu0 %v529
        %v1505 = vpop.f32.mrb[0].mxu0
        %v1506 = vadd.f32 %v1361, %v1505
        %v1507 = vpop.f32.mrb[0].mxu0
        %1508 = vmatprep.mubr.f32.mxu0 %v544
        %1509 = vmatmul.mubr.f32.gmra.mrb[0].mxu0 %v543
        %v1510 = vpop.f32.mrb[0].mxu0
        %v1511 = vadd.f32 %v1366, %v1510
        %v1512 = vpop.f32.mrb[0].mxu0
        %1513 = vmatprep.mubr.f32.mxu0 %v558
        %1514 = vmatmul.mubr.f32.gmra.mrb[0].mxu0 %v557
        %v1515 = vpop.f32.mrb[0].mxu0
        %v1516 = vadd.f32 %v1371, %v1515
        %v1517 = vpop.f32.mrb[0].mxu0
        %1518 = vdwg.mxu0
        %1519 = vmatprep.subr.mxu0 0.0
        %1520 = vmatpush1.msra.mxu0 %v723
        %1521 = vmatprep.subr.mxu0 0.0
        %1522 = vmatpush1.msra.mxu0 %v724
        %1523 = vmatprep.subr.mxu0 0.0
        %1524 = vmatpush1.msra.mxu0 %v725
        %1525 = vmatprep.subr.mxu0 0.0
        %1526 = vmatpush1.msra.mxu0 %v726
        %1527 = vmatprep.subr.mxu0 0.0
        %1528 = vmatpush1.msra.mxu0 %v727
        %1529 = vmatprep.subr.mxu0 0.0
        %1530 = vmatpush1.msra.mxu0 %v728
        %1531 = vmatprep.subr.mxu0 0.0
        %1532 = vmatpush1.msra.mxu0 %v729
        %1533 = vmatprep.subr.mxu0 0.0
        %1534 = vmatpush1.msra.mxu0 %v730
        %1535 = vmatprep.subr.mxu0 0.0
        %1536 = vmatpush1.msra.mxu0 %v731
        %1537 = vmatprep.subr.mxu0 0.0
        %1538 = vmatpush1.msra.mxu0 %v732
        %1539 = vmatprep.subr.mxu0 0.0
        %1540 = vmatpush1.msra.mxu0 %v733
        %1541 = vmatprep.subr.mxu0 0.0
        %1542 = vmatpush1.msra.mxu0 %v734
        %1543 = vmatprep.subr.mxu0 0.0
        %1544 = vmatpush1.msra.mxu0 %v735
        %1545 = vmatprep.subr.mxu0 0.0
        %1546 = vmatpush1.msra.mxu0 %v736
        %1547 = vmatprep.subr.mxu0 0.0
        %1548 = vmatpush1.msra.mxu0 %v737
        %1549 = vmatprep.subr.mxu0 0.0
        %1550 = vmatpush1.msra.mxu0 %v738
        %1551 = vmatprep.subr.mxu0 0.0
        %1552 = vmatpush1.msra.mxu0 %v739
        %1553 = vmatprep.subr.mxu0 0.0
        %1554 = vmatpush1.msra.mxu0 %v740
        %1555 = vmatprep.subr.mxu0 0.0
        %1556 = vmatpush1.msra.mxu0 %v741
        %1557 = vmatprep.subr.mxu0 0.0
        %1558 = vmatpush1.msra.mxu0 %v742
        %1559 = vmatprep.subr.mxu0 0.0
        %1560 = vmatpush1.msra.mxu0 %v743
        %1561 = vmatprep.subr.mxu0 0.0
        %1562 = vmatpush1.msra.mxu0 %v744
        %1563 = vmatprep.subr.mxu0 0.0
        %1564 = vmatpush1.msra.mxu0 %v745
        %1565 = vmatprep.subr.mxu0 0.0
        %1566 = vmatpush1.msra.mxu0 %v746
        %1567 = vmatprep.subr.mxu0 0.0
        %1568 = vmatpush1.msra.mxu0 %v747
        %1569 = vmatprep.subr.mxu0 0.0
        %1570 = vmatpush1.msra.mxu0 %v748
        %1571 = vmatprep.subr.mxu0 0.0
        %1572 = vmatpush1.msra.mxu0 %v749
        %1573 = vmatprep.subr.mxu0 0.0
        %1574 = vmatpush1.msra.mxu0 %v750
        %1575 = vmatprep.subr.mxu0 0.0
        %1576 = vmatpush1.msra.mxu0 %v751
        %1577 = vmatprep.subr.mxu0 0.0
        %1578 = vmatpush1.msra.mxu0 %v752
        %1579 = vmatprep.subr.mxu0 0.0
        %1580 = vmatpush1.msra.mxu0 %v753
        %1581 = vmatprep.subr.mxu0 0.0
        %1582 = vmatpush1.msra.mxu0 %v754
        %1583 = vmatprep.mubr.f32.mxu0 %v350
        %1584 = vmatmul.mubr.f32.gmra.mrb[0].mxu0 %v349
        %v1585 = vpop.f32.mrb[0].mxu0
        %v1586 = vadd.f32 %v1441, %v1585
        %v1587 = vpop.f32.mrb[0].mxu0
        %1588 = vmatprep.mubr.f32.mxu0 %v364
        %1589 = vmatmul.mubr.f32.gmra.mrb[0].mxu0 %v363
        %v1590 = vpop.f32.mrb[0].mxu0
        %v1591 = vadd.f32 %v1446, %v1590
        %v1592 = vpop.f32.mrb[0].mxu0
        %1593 = vmatprep.mubr.f32.mxu0 %v378
        %1594 = vmatmul.mubr.f32.gmra.mrb[0].mxu0 %v377
        %v1595 = vpop.f32.mrb[0].mxu0
        %v1596 = vadd.f32 %v1451, %v1595
        %v1597 = vpop.f32.mrb[0].mxu0
        %1598 = vmatprep.mubr.f32.mxu0 %v392
        %1599 = vmatmul.mubr.f32.gmra.mrb[0].mxu0 %v391
        %v1600 = vpop.f32.mrb[0].mxu0
        %v1601 = vadd.f32 %v1456, %v1600
        %v1602 = vpop.f32.mrb[0].mxu0
        %1603 = vmatprep.mubr.f32.mxu0 %v406
        %1604 = vmatmul.mubr.f32.gmra.mrb[0].mxu0 %v405
        %v1605 = vpop.f32.mrb[0].mxu0
        %v1606 = vadd.f32 %v1461, %v1605
        %v1607 = vpop.f32.mrb[0].mxu0
        %1608 = vmatprep.mubr.f32.mxu0 %v420
        %1609 = vmatmul.mubr.f32.gmra.mrb[0].mxu0 %v419
        %v1610 = vpop.f32.mrb[0].mxu0
        %v1611 = vadd.f32 %v1466, %v1610
        %v1612 = vpop.f32.mrb[0].mxu0
        %1613 = vmatprep.mubr.f32.mxu0 %v434
        %1614 = vmatmul.mubr.f32.gmra.mrb[0].mxu0 %v433
        %v1615 = vpop.f32.mrb[0].mxu0
        %v1616 = vadd.f32 %v1471, %v1615
        %v1617 = vpop.f32.mrb[0].mxu0
        %1618 = vmatprep.mubr.f32.mxu0 %v448
        %1619 = vmatmul.mubr.f32.gmra.mrb[0].mxu0 %v447
        %v1620 = vpop.f32.mrb[0].mxu0
        %v1621 = vadd.f32 %v1476, %v1620
        %v1622 = vpop.f32.mrb[0].mxu0
        %1623 = vmatprep.mubr.f32.mxu0 %v462
        %1624 = vmatmul.mubr.f32.gmra.mrb[0].mxu0 %v461
        %v1625 = vpop.f32.mrb[0].mxu0
        %v1626 = vadd.f32 %v1481, %v1625
        %v1627 = vpop.f32.mrb[0].mxu0
        %1628 = vmatprep.mubr.f32.mxu0 %v476
        %1629 = vmatmul.mubr.f32.gmra.mrb[0].mxu0 %v475
        %v1630 = vpop.f32.mrb[0].mxu0
        %v1631 = vadd.f32 %v1486, %v1630
        %v1632 = vpop.f32.mrb[0].mxu0
        %1633 = vmatprep.mubr.f32.mxu0 %v490
        %1634 = vmatmul.mubr.f32.gmra.mrb[0].mxu0 %v489
        %v1635 = vpop.f32.mrb[0].mxu0
        %v1636 = vadd.f32 %v1491, %v1635
        %v1637 = vpop.f32.mrb[0].mxu0
        %1638 = vmatprep.mubr.f32.mxu0 %v504
        %1639 = vmatmul.mubr.f32.gmra.mrb[0].mxu0 %v503
        %v1640 = vpop.f32.mrb[0].mxu0
        %v1641 = vadd.f32 %v1496, %v1640
        %v1642 = vpop.f32.mrb[0].mxu0
        %1643 = vmatprep.mubr.f32.mxu0 %v518
        %1644 = vmatmul.mubr.f32.gmra.mrb[0].mxu0 %v517
        %v1645 = vpop.f32.mrb[0].mxu0
        %v1646 = vadd.f32 %v1501, %v1645
        %v1647 = vpop.f32.mrb[0].mxu0
        %1648 = vmatprep.mubr.f32.mxu0 %v532
        %1649 = vmatmul.mubr.f32.gmra.mrb[0].mxu0 %v531
        %v1650 = vpop.f32.mrb[0].mxu0
        %v1651 = vadd.f32 %v1506, %v1650
        %v1652 = vpop.f32.mrb[0].mxu0
        %1653 = vmatprep.mubr.f32.mxu0 %v546
        %1654 = vmatmul.mubr.f32.gmra.mrb[0].mxu0 %v545
        %v1655 = vpop.f32.mrb[0].mxu0
        %v1656 = vadd.f32 %v1511, %v1655
        %v1657 = vpop.f32.mrb[0].mxu0
        %1658 = vmatprep.mubr.f32.mxu0 %v560
        %1659 = vmatmul.mubr.f32.gmra.mrb[0].mxu0 %v559
        %v1660 = vpop.f32.mrb[0].mxu0
        %v1661 = vadd.f32 %v1516, %v1660
        %v1662 = vpop.f32.mrb[0].mxu0
        %1663 = vdwg.mxu0
        %1664 = vmatprep.subr.mxu0 0.0
        %1665 = vmatpush1.msra.mxu0 %v755
        %1666 = vmatprep.subr.mxu0 0.0
        %1667 = vmatpush1.msra.mxu0 %v756
        %1668 = vmatprep.subr.mxu0 0.0
        %1669 = vmatpush1.msra.mxu0 %v757
        %1670 = vmatprep.subr.mxu0 0.0
        %1671 = vmatpush1.msra.mxu0 %v758
        %1672 = vmatprep.subr.mxu0 0.0
        %1673 = vmatpush1.msra.mxu0 %v759
        %1674 = vmatprep.subr.mxu0 0.0
        %1675 = vmatpush1.msra.mxu0 %v760
        %1676 = vmatprep.subr.mxu0 0.0
        %1677 = vmatpush1.msra.mxu0 %v761
        %1678 = vmatprep.subr.mxu0 0.0
        %1679 = vmatpush1.msra.mxu0 %v762
        %1680 = vmatprep.subr.mxu0 0.0
        %1681 = vmatpush1.msra.mxu0 %v763
        %1682 = vmatprep.subr.mxu0 0.0
        %1683 = vmatpush1.msra.mxu0 %v764
        %1684 = vmatprep.subr.mxu0 0.0
        %1685 = vmatpush1.msra.mxu0 %v765
        %1686 = vmatprep.subr.mxu0 0.0
        %1687 = vmatpush1.msra.mxu0 %v766
        %1688 = vmatprep.subr.mxu0 0.0
        %1689 = vmatpush1.msra.mxu0 %v767
        %1690 = vmatprep.subr.mxu0 0.0
        %1691 = vmatpush1.msra.mxu0 %v768
        %1692 = vmatprep.subr.mxu0 0.0
        %1693 = vmatpush1.msra.mxu0 %v769
        %1694 = vmatprep.subr.mxu0 0.0
        %1695 = vmatpush1.msra.mxu0 %v770
        %1696 = vmatprep.subr.mxu0 0.0
        %1697 = vmatpush1.msra.mxu0 %v771
        %1698 = vmatprep.subr.mxu0 0.0
        %1699 = vmatpush1.msra.mxu0 %v772
        %1700 = vmatprep.subr.mxu0 0.0
        %1701 = vmatpush1.msra.mxu0 %v773
        %1702 = vmatprep.subr.mxu0 0.0
        %1703 = vmatpush1.msra.mxu0 %v774
        %1704 = vmatprep.subr.mxu0 0.0
        %1705 = vmatpush1.msra.mxu0 %v775
        %1706 = vmatprep.subr.mxu0 0.0
        %1707 = vmatpush1.msra.mxu0 %v776
        %1708 = vmatprep.subr.mxu0 0.0
        %1709 = vmatpush1.msra.mxu0 %v777
        %1710 = vmatprep.subr.mxu0 0.0
        %1711 = vmatpush1.msra.mxu0 %v778
        %1712 = vmatprep.subr.mxu0 0.0
        %1713 = vmatpush1.msra.mxu0 %v779
        %1714 = vmatprep.subr.mxu0 0.0
        %1715 = vmatpush1.msra.mxu0 %v780
        %1716 = vmatprep.subr.mxu0 0.0
        %1717 = vmatpush1.msra.mxu0 %v781
        %1718 = vmatprep.subr.mxu0 0.0
        %1719 = vmatpush1.msra.mxu0 %v782
        %1720 = vmatprep.subr.mxu0 0.0
        %1721 = vmatpush1.msra.mxu0 %v783
        %1722 = vmatprep.subr.mxu0 0.0
        %1723 = vmatpush1.msra.mxu0 %v784
        %1724 = vmatprep.subr.mxu0 0.0
        %1725 = vmatpush1.msra.mxu0 %v785
        %1726 = vmatprep.subr.mxu0 0.0
        %1727 = vmatpush1.msra.mxu0 %v786
        %1728 = vmatprep.mubr.f32.mxu0 %v352
        %1729 = vmatmul.mubr.f32.gmra.mrb[0].mxu0 %v351
        %v1730 = vpop.f32.mrb[0].mxu0
        %v1731 = vadd.f32 %v1586, %v1730
        %v1732 = vpop.f32.mrb[0].mxu0
        %1733 = vmatprep.mubr.f32.mxu0 %v366
        %1734 = vmatmul.mubr.f32.gmra.mrb[0].mxu0 %v365
        %v1735 = vpop.f32.mrb[0].mxu0
        %v1736 = vadd.f32 %v1591, %v1735
        %v1737 = vpop.f32.mrb[0].mxu0
        %1738 = vmatprep.mubr.f32.mxu0 %v380
        %1739 = vmatmul.mubr.f32.gmra.mrb[0].mxu0 %v379
        %v1740 = vpop.f32.mrb[0].mxu0
        %v1741 = vadd.f32 %v1596, %v1740
        %v1742 = vpop.f32.mrb[0].mxu0
        %1743 = vmatprep.mubr.f32.mxu0 %v394
        %1744 = vmatmul.mubr.f32.gmra.mrb[0].mxu0 %v393
        %v1745 = vpop.f32.mrb[0].mxu0
        %v1746 = vadd.f32 %v1601, %v1745
        %v1747 = vpop.f32.mrb[0].mxu0
        %1748 = vmatprep.mubr.f32.mxu0 %v408
        %1749 = vmatmul.mubr.f32.gmra.mrb[0].mxu0 %v407
        %v1750 = vpop.f32.mrb[0].mxu0
        %v1751 = vadd.f32 %v1606, %v1750
        %v1752 = vpop.f32.mrb[0].mxu0
        %1753 = vmatprep.mubr.f32.mxu0 %v422
        %1754 = vmatmul.mubr.f32.gmra.mrb[0].mxu0 %v421
        %v1755 = vpop.f32.mrb[0].mxu0
        %v1756 = vadd.f32 %v1611, %v1755
        %v1757 = vpop.f32.mrb[0].mxu0
        %1758 = vmatprep.mubr.f32.mxu0 %v436
        %1759 = vmatmul.mubr.f32.gmra.mrb[0].mxu0 %v435
        %v1760 = vpop.f32.mrb[0].mxu0
        %v1761 = vadd.f32 %v1616, %v1760
        %v1762 = vpop.f32.mrb[0].mxu0
        %1763 = vmatprep.mubr.f32.mxu0 %v450
        %1764 = vmatmul.mubr.f32.gmra.mrb[0].mxu0 %v449
        %v1765 = vpop.f32.mrb[0].mxu0
        %v1766 = vadd.f32 %v1621, %v1765
        %v1767 = vpop.f32.mrb[0].mxu0
        %1768 = vmatprep.mubr.f32.mxu0 %v464
        %1769 = vmatmul.mubr.f32.gmra.mrb[0].mxu0 %v463
        %v1770 = vpop.f32.mrb[0].mxu0
        %v1771 = vadd.f32 %v1626, %v1770
        %v1772 = vpop.f32.mrb[0].mxu0
        %1773 = vmatprep.mubr.f32.mxu0 %v478
        %1774 = vmatmul.mubr.f32.gmra.mrb[0].mxu0 %v477
        %v1775 = vpop.f32.mrb[0].mxu0
        %v1776 = vadd.f32 %v1631, %v1775
        %v1777 = vpop.f32.mrb[0].mxu0
        %1778 = vmatprep.mubr.f32.mxu0 %v492
        %1779 = vmatmul.mubr.f32.gmra.mrb[0].mxu0 %v491
        %v1780 = vpop.f32.mrb[0].mxu0
        %v1781 = vadd.f32 %v1636, %v1780
        %v1782 = vpop.f32.mrb[0].mxu0
        %1783 = vmatprep.mubr.f32.mxu0 %v506
        %1784 = vmatmul.mubr.f32.gmra.mrb[0].mxu0 %v505
        %v1785 = vpop.f32.mrb[0].mxu0
        %v1786 = vadd.f32 %v1641, %v1785
        %v1787 = vpop.f32.mrb[0].mxu0
        %1788 = vmatprep.mubr.f32.mxu0 %v520
        %1789 = vmatmul.mubr.f32.gmra.mrb[0].mxu0 %v519
        %v1790 = vpop.f32.mrb[0].mxu0
        %v1791 = vadd.f32 %v1646, %v1790
        %v1792 = vpop.f32.mrb[0].mxu0
        %1793 = vmatprep.mubr.f32.mxu0 %v534
        %1794 = vmatmul.mubr.f32.gmra.mrb[0].mxu0 %v533
        %v1795 = vpop.f32.mrb[0].mxu0
        %v1796 = vadd.f32 %v1651, %v1795
        %v1797 = vpop.f32.mrb[0].mxu0
        %1798 = vmatprep.mubr.f32.mxu0 %v548
        %1799 = vmatmul.mubr.f32.gmra.mrb[0].mxu0 %v547
        %v1800 = vpop.f32.mrb[0].mxu0
        %v1801 = vadd.f32 %v1656, %v1800
        %v1802 = vpop.f32.mrb[0].mxu0
        %1803 = vmatprep.mubr.f32.mxu0 %v562
        %1804 = vmatmul.mubr.f32.gmra.mrb[0].mxu0 %v561
        %v1805 = vpop.f32.mrb[0].mxu0
        %v1806 = vadd.f32 %v1661, %v1805
        %v1807 = vpop.f32.mrb[0].mxu0
        %1808 = vdwg.mxu0
        %vm1809 = vcmp.gt.f32.partialorder %v1731, 0.0
        %vm1810 = vcmp.gt.f32.partialorder %v1736, 0.0
        %vm1811 = vcmp.gt.f32.partialorder %v1741, 0.0
        %vm1812 = vcmp.gt.f32.partialorder %v1746, 0.0
        %vm1813 = vcmp.gt.f32.partialorder %v1751, 0.0
        %vm1814 = vcmp.gt.f32.partialorder %v1756, 0.0
        %vm1815 = vcmp.gt.f32.partialorder %v1761, 0.0
        %vm1816 = vcmp.gt.f32.partialorder %v1766, 0.0
        %vm1817 = vcmp.gt.f32.partialorder %v1771, 0.0
        %vm1818 = vcmp.gt.f32.partialorder %v1776, 0.0
        %vm1819 = vcmp.gt.f32.partialorder %v1781, 0.0
        %vm1820 = vcmp.gt.f32.partialorder %v1786, 0.0
        %vm1821 = vcmp.gt.f32.partialorder %v1791, 0.0
        %vm1822 = vcmp.gt.f32.partialorder %v1796, 0.0
        %vm1823 = vcmp.gt.f32.partialorder %v1801, 0.0
        %vm1824 = vcmp.gt.f32.partialorder %v1806, 0.0
        %v1825 = vmul.f32 %v1731, 0.01
        %v1826 = vmul.f32 %v1736, 0.01
        %v1827 = vmul.f32 %v1741, 0.01
        %v1828 = vmul.f32 %v1746, 0.01
        %v1829 = vmul.f32 %v1751, 0.01
        %v1830 = vmul.f32 %v1756, 0.01
        %v1831 = vmul.f32 %v1761, 0.01
        %v1832 = vmul.f32 %v1766, 0.01
        %v1833 = vmul.f32 %v1771, 0.01
        %v1834 = vmul.f32 %v1776, 0.01
        %v1835 = vmul.f32 %v1781, 0.01
        %v1836 = vmul.f32 %v1786, 0.01
        %v1837 = vmul.f32 %v1791, 0.01
        %v1838 = vmul.f32 %v1796, 0.01
        %v1839 = vmul.f32 %v1801, 0.01
        %v1840 = vmul.f32 %v1806, 0.01
        %v1841 = vsel %vm1809, %v1731, %v1825
        %v1842 = vsel %vm1810, %v1736, %v1826
        %v1843 = vsel %vm1811, %v1741, %v1827
        %v1844 = vsel %vm1812, %v1746, %v1828
        %v1845 = vsel %vm1813, %v1751, %v1829
        %v1846 = vsel %vm1814, %v1756, %v1830
        %v1847 = vsel %vm1815, %v1761, %v1831
        %v1848 = vsel %vm1816, %v1766, %v1832
        %v1849 = vsel %vm1817, %v1771, %v1833
        %v1850 = vsel %vm1818, %v1776, %v1834
        %v1851 = vsel %vm1819, %v1781, %v1835
        %v1852 = vsel %vm1820, %v1786, %v1836
        %v1853 = vsel %vm1821, %v1791, %v1837
        %v1854 = vsel %vm1822, %v1796, %v1838
        %v1855 = vsel %vm1823, %v1801, %v1839
        %v1856 = vsel %vm1824, %v1806, %v1840
        %v1857 = vld [vmem:[#allocation8] sm:$0xff]
        %v1858 = vld [vmem:[#allocation8 + $0x8] sm:$0xff]
        %v1859 = vld [vmem:[#allocation8 + $0x10] sm:$0xff]
        %v1860 = vld [vmem:[#allocation8 + $0x18] sm:$0xff]
        %v1861 = vld [vmem:[#allocation8 + $0x20] sm:$0xff]
        %v1862 = vld [vmem:[#allocation8 + $0x28] sm:$0xff]
        %v1863 = vld [vmem:[#allocation8 + $0x30] sm:$0xff]
        %v1864 = vld [vmem:[#allocation8 + $0x38] sm:$0xff]
        %v1865 = vld [vmem:[#allocation8 + $0x40] sm:$0xff]
        %v1866 = vld [vmem:[#allocation8 + $0x48] sm:$0xff]
        %v1867 = vld [vmem:[#allocation8 + $0x50] sm:$0xff]
        %v1868 = vld [vmem:[#allocation8 + $0x58] sm:$0xff]
        %v1869 = vld [vmem:[#allocation8 + $0x60] sm:$0xff]
        %v1870 = vld [vmem:[#allocation8 + $0x68] sm:$0xff]
        %v1871 = vld [vmem:[#allocation8 + $0x70] sm:$0xff]
        %v1872 = vld [vmem:[#allocation8 + $0x78] sm:$0xff]
        %v1873 = vld [vmem:[#allocation10] sm:$0x1]
        %v1875 = vlaneseq
        %v1876 = vshrl.u32 %v1875, 7
        %v1877 = vsub.s32 0, %v1876
        %v1878 = vrot.slane %v1873, %v1877
        %1880 = vmatprep.subr.mxu0 0.0
        %1881 = vmatpush1.msra.mxu0 %v1857
        %1882 = vmatprep.subr.mxu0 0.0
        %1883 = vmatpush1.msra.mxu0 %v1858
        %1884 = vmatprep.subr.mxu0 0.0
        %1885 = vmatpush1.msra.mxu0 %v1859
        %1886 = vmatprep.subr.mxu0 0.0
        %1887 = vmatpush1.msra.mxu0 %v1860
        %1888 = vmatprep.subr.mxu0 0.0
        %1889 = vmatpush1.msra.mxu0 %v1861
        %1890 = vmatprep.subr.mxu0 0.0
        %1891 = vmatpush1.msra.mxu0 %v1862
        %1892 = vmatprep.subr.mxu0 0.0
        %1893 = vmatpush1.msra.mxu0 %v1863
        %1894 = vmatprep.subr.mxu0 0.0
        %1895 = vmatpush1.msra.mxu0 %v1864
        %1896 = vmatprep.subr.mxu0 0.0
        %1897 = vmatpush1.msra.mxu0 %v1865
        %1898 = vmatprep.subr.mxu0 0.0
        %1899 = vmatpush1.msra.mxu0 %v1866
        %1900 = vmatprep.subr.mxu0 0.0
        %1901 = vmatpush1.msra.mxu0 %v1867
        %1902 = vmatprep.subr.mxu0 0.0
        %1903 = vmatpush1.msra.mxu0 %v1868
        %1904 = vmatprep.subr.mxu0 0.0
        %1905 = vmatpush1.msra.mxu0 %v1869
        %1906 = vmatprep.subr.mxu0 0.0
        %1907 = vmatpush1.msra.mxu0 %v1870
        %1908 = vmatprep.subr.mxu0 0.0
        %1909 = vmatpush1.msra.mxu0 %v1871
        %1910 = vmatprep.subr.mxu0 0.0
        %1911 = vmatpush1.msra.mxu0 %v1872
        %1912 = vmatprep.subr.mxu0 0.0
        %1913 = vmatpush1.msra.mxu0 0.0
        %1914 = vmatprep.subr.mxu0 0.0
        %1915 = vmatpush1.msra.mxu0 0.0
        %1916 = vmatprep.subr.mxu0 0.0
        %1917 = vmatpush1.msra.mxu0 0.0
        %1918 = vmatprep.subr.mxu0 0.0
        %1919 = vmatpush1.msra.mxu0 0.0
        %1920 = vmatprep.subr.mxu0 0.0
        %1921 = vmatpush1.msra.mxu0 0.0
        %1922 = vmatprep.subr.mxu0 0.0
        %1923 = vmatpush1.msra.mxu0 0.0
        %1924 = vmatprep.subr.mxu0 0.0
        %1925 = vmatpush1.msra.mxu0 0.0
        %1926 = vmatprep.subr.mxu0 0.0
        %1927 = vmatpush1.msra.mxu0 0.0
        %1928 = vmatprep.subr.mxu0 0.0
        %1929 = vmatpush1.msra.mxu0 0.0
        %1930 = vmatprep.subr.mxu0 0.0
        %1931 = vmatpush1.msra.mxu0 0.0
        %1932 = vmatprep.subr.mxu0 0.0
        %1933 = vmatpush1.msra.mxu0 0.0
        %1934 = vmatprep.subr.mxu0 0.0
        %1935 = vmatpush1.msra.mxu0 0.0
        %1936 = vmatprep.subr.mxu0 0.0
        %1937 = vmatpush1.msra.mxu0 0.0
        %1938 = vmatprep.subr.mxu0 0.0
        %1939 = vmatpush1.msra.mxu0 0.0
        %1940 = vmatprep.subr.mxu0 0.0
        %1941 = vmatpush1.msra.mxu0 0.0
        %1942 = vmatprep.subr.mxu0 0.0
        %1943 = vmatpush1.msra.mxu0 0.0
        %1944 = vmatprep.mubr.f32.mxu0 0.0
        %1945 = vmatmul.mubr.f32.gmra.mrb[0].mxu0 %v1841
        %v1946 = vpop.f32.mrb[0].mxu0
        %v1947 = vadd.f32 %v1878, %v1946
        %v1948 = vpop.f32.mrb[0].mxu0
        %1949 = vmatprep.mubr.f32.mxu0 0.0
        %1950 = vmatmul.mubr.f32.gmra.mrb[0].mxu0 %v1842
        %v1951 = vpop.f32.mrb[0].mxu0
        %v1952 = vadd.f32 %v1878, %v1951
        %v1953 = vpop.f32.mrb[0].mxu0
        %1954 = vmatprep.mubr.f32.mxu0 0.0
        %1955 = vmatmul.mubr.f32.gmra.mrb[0].mxu0 %v1843
        %v1956 = vpop.f32.mrb[0].mxu0
        %v1957 = vadd.f32 %v1878, %v1956
        %v1958 = vpop.f32.mrb[0].mxu0
        %1959 = vmatprep.mubr.f32.mxu0 0.0
        %1960 = vmatmul.mubr.f32.gmra.mrb[0].mxu0 %v1844
        %v1961 = vpop.f32.mrb[0].mxu0
        %v1962 = vadd.f32 %v1878, %v1961
        %v1963 = vpop.f32.mrb[0].mxu0
        %1964 = vmatprep.mubr.f32.mxu0 0.0
        %1965 = vmatmul.mubr.f32.gmra.mrb[0].mxu0 %v1845
        %v1966 = vpop.f32.mrb[0].mxu0
        %v1967 = vadd.f32 %v1878, %v1966
        %v1968 = vpop.f32.mrb[0].mxu0
        %1969 = vmatprep.mubr.f32.mxu0 0.0
        %1970 = vmatmul.mubr.f32.gmra.mrb[0].mxu0 %v1846
        %v1971 = vpop.f32.mrb[0].mxu0
        %v1972 = vadd.f32 %v1878, %v1971
        %v1973 = vpop.f32.mrb[0].mxu0
        %1974 = vmatprep.mubr.f32.mxu0 0.0
        %1975 = vmatmul.mubr.f32.gmra.mrb[0].mxu0 %v1847
        %v1976 = vpop.f32.mrb[0].mxu0
        %v1977 = vadd.f32 %v1878, %v1976
        %v1978 = vpop.f32.mrb[0].mxu0
        %1979 = vmatprep.mubr.f32.mxu0 0.0
        %1980 = vmatmul.mubr.f32.gmra.mrb[0].mxu0 %v1848
        %v1981 = vpop.f32.mrb[0].mxu0
        %v1982 = vadd.f32 %v1878, %v1981
        %v1983 = vpop.f32.mrb[0].mxu0
        %1984 = vmatprep.mubr.f32.mxu0 0.0
        %1985 = vmatmul.mubr.f32.gmra.mrb[0].mxu0 %v1849
        %v1986 = vpop.f32.mrb[0].mxu0
        %v1987 = vadd.f32 %v1878, %v1986
        %v1988 = vpop.f32.mrb[0].mxu0
        %1989 = vmatprep.mubr.f32.mxu0 0.0
        %1990 = vmatmul.mubr.f32.gmra.mrb[0].mxu0 %v1850
        %v1991 = vpop.f32.mrb[0].mxu0
        %v1992 = vadd.f32 %v1878, %v1991
        %v1993 = vpop.f32.mrb[0].mxu0
        %1994 = vmatprep.mubr.f32.mxu0 0.0
        %1995 = vmatmul.mubr.f32.gmra.mrb[0].mxu0 %v1851
        %v1996 = vpop.f32.mrb[0].mxu0
        %v1997 = vadd.f32 %v1878, %v1996
        %v1998 = vpop.f32.mrb[0].mxu0
        %1999 = vmatprep.mubr.f32.mxu0 0.0
        %2000 = vmatmul.mubr.f32.gmra.mrb[0].mxu0 %v1852
        %v2001 = vpop.f32.mrb[0].mxu0
        %v2002 = vadd.f32 %v1878, %v2001
        %v2003 = vpop.f32.mrb[0].mxu0
        %2004 = vmatprep.mubr.f32.mxu0 0.0
        %2005 = vmatmul.mubr.f32.gmra.mrb[0].mxu0 %v1853
        %v2006 = vpop.f32.mrb[0].mxu0
        %v2007 = vadd.f32 %v1878, %v2006
        %v2008 = vpop.f32.mrb[0].mxu0
        %2009 = vmatprep.mubr.f32.mxu0 0.0
        %2010 = vmatmul.mubr.f32.gmra.mrb[0].mxu0 %v1854
        %v2011 = vpop.f32.mrb[0].mxu0
        %v2012 = vadd.f32 %v1878, %v2011
        %v2013 = vpop.f32.mrb[0].mxu0
        %2014 = vmatprep.mubr.f32.mxu0 0.0
        %2015 = vmatmul.mubr.f32.gmra.mrb[0].mxu0 %v1855
        %v2016 = vpop.f32.mrb[0].mxu0
        %v2017 = vadd.f32 %v1878, %v2016
        %v2018 = vpop.f32.mrb[0].mxu0
        %2019 = vmatprep.mubr.f32.mxu0 0.0
        %2020 = vmatmul.mubr.f32.gmra.mrb[0].mxu0 %v1856
        %v2021 = vpop.f32.mrb[0].mxu0
        %v2022 = vadd.f32 %v1878, %v2021
        %v2023 = vpop.f32.mrb[0].mxu0
        %2024 = vdwg.mxu0
        %vm2025 = vcmp.gt.f32.partialorder %v1947, 0.0
        %vm2026 = vcmp.gt.f32.partialorder %v1952, 0.0
        %vm2027 = vcmp.gt.f32.partialorder %v1957, 0.0
        %vm2028 = vcmp.gt.f32.partialorder %v1962, 0.0
        %vm2029 = vcmp.gt.f32.partialorder %v1967, 0.0
        %vm2030 = vcmp.gt.f32.partialorder %v1972, 0.0
        %vm2031 = vcmp.gt.f32.partialorder %v1977, 0.0
        %vm2032 = vcmp.gt.f32.partialorder %v1982, 0.0
        %vm2033 = vcmp.gt.f32.partialorder %v1987, 0.0
        %vm2034 = vcmp.gt.f32.partialorder %v1992, 0.0
        %vm2035 = vcmp.gt.f32.partialorder %v1997, 0.0
        %vm2036 = vcmp.gt.f32.partialorder %v2002, 0.0
        %vm2037 = vcmp.gt.f32.partialorder %v2007, 0.0
        %vm2038 = vcmp.gt.f32.partialorder %v2012, 0.0
        %vm2039 = vcmp.gt.f32.partialorder %v2017, 0.0
        %vm2040 = vcmp.gt.f32.partialorder %v2022, 0.0
        %v2041 = vmul.f32 %v1947, 0.01
        %v2042 = vmul.f32 %v1952, 0.01
        %v2043 = vmul.f32 %v1957, 0.01
        %v2044 = vmul.f32 %v1962, 0.01
        %v2045 = vmul.f32 %v1967, 0.01
        %v2046 = vmul.f32 %v1972, 0.01
        %v2047 = vmul.f32 %v1977, 0.01
        %v2048 = vmul.f32 %v1982, 0.01
        %v2049 = vmul.f32 %v1987, 0.01
        %v2050 = vmul.f32 %v1992, 0.01
        %v2051 = vmul.f32 %v1997, 0.01
        %v2052 = vmul.f32 %v2002, 0.01
        %v2053 = vmul.f32 %v2007, 0.01
        %v2054 = vmul.f32 %v2012, 0.01
        %v2055 = vmul.f32 %v2017, 0.01
        %v2056 = vmul.f32 %v2022, 0.01
        %v2057 = vsel %vm2025, %v1947, %v2041
        %v2058 = vsel %vm2026, %v1952, %v2042
        %v2059 = vsel %vm2027, %v1957, %v2043
        %v2060 = vsel %vm2028, %v1962, %v2044
        %v2061 = vsel %vm2029, %v1967, %v2045
        %v2062 = vsel %vm2030, %v1972, %v2046
        %v2063 = vsel %vm2031, %v1977, %v2047
        %v2064 = vsel %vm2032, %v1982, %v2048
        %v2065 = vsel %vm2033, %v1987, %v2049
        %v2066 = vsel %vm2034, %v1992, %v2050
        %v2067 = vsel %vm2035, %v1997, %v2051
        %v2068 = vsel %vm2036, %v2002, %v2052
        %v2069 = vsel %vm2037, %v2007, %v2053
        %v2070 = vsel %vm2038, %v2012, %v2054
        %v2071 = vsel %vm2039, %v2017, %v2055
        %v2072 = vsel %vm2040, %v2022, %v2056
        %2073 = vst [vmem:[%s328] sm:$0xff] %v2057
        %2074 = vst [vmem:[%s328 + $0x8] sm:$0xff] %v2058
        %2075 = vst [vmem:[%s328 + $0x10] sm:$0xff] %v2059
        %2076 = vst [vmem:[%s328 + $0x18] sm:$0xff] %v2060
        %2077 = vst [vmem:[%s328 + $0x20] sm:$0xff] %v2061
        %2078 = vst [vmem:[%s328 + $0x28] sm:$0xff] %v2062
        %2079 = vst [vmem:[%s328 + $0x30] sm:$0xff] %v2063
        %2080 = vst [vmem:[%s328 + $0x38] sm:$0xff] %v2064
        %2081 = vst [vmem:[%s328 + $0x40] sm:$0xff] %v2065
        %2082 = vst [vmem:[%s328 + $0x48] sm:$0xff] %v2066
        %2083 = vst [vmem:[%s328 + $0x50] sm:$0xff] %v2067
        %2084 = vst [vmem:[%s328 + $0x58] sm:$0xff] %v2068
        %2085 = vst [vmem:[%s328 + $0x60] sm:$0xff] %v2069
        %2086 = vst [vmem:[%s328 + $0x68] sm:$0xff] %v2070
        %2087 = vst [vmem:[%s328 + $0x70] sm:$0xff] %v2071
        %2088 = vst [vmem:[%s328 + $0x78] sm:$0xff] %v2072
        %v2089 = vpack.c.bf16 %v2058, %v2057
        %v2090 = vpack.c.bf16 %v2060, %v2059
        %v2091 = vpack.c.bf16 %v2062, %v2061
        %v2092 = vpack.c.bf16 %v2064, %v2063
        %v2093 = vpack.c.bf16 %v2066, %v2065
        %v2094 = vpack.c.bf16 %v2068, %v2067
        %v2095 = vpack.c.bf16 %v2070, %v2069
        %v2096 = vpack.c.bf16 %v2072, %v2071
        %v2105 = vunpack.c.l.b16 %v2089
        %v2106 = vunpack.c.h.b16 %v2089
        %v2107 = vunpack.c.l.b16 %v2090
        %v2108 = vunpack.c.h.b16 %v2090
        %v2109 = vunpack.c.l.b16 %v2091
        %v2110 = vunpack.c.h.b16 %v2091
        %v2111 = vunpack.c.l.b16 %v2092
        %v2112 = vunpack.c.h.b16 %v2092
        %v2113 = vunpack.c.l.b16 %v2093
        %v2114 = vunpack.c.h.b16 %v2093
        %v2115 = vunpack.c.l.b16 %v2094
        %v2116 = vunpack.c.h.b16 %v2094
        %v2117 = vunpack.c.l.b16 %v2095
        %v2118 = vunpack.c.h.b16 %v2095
        %v2119 = vunpack.c.l.b16 %v2096
        %v2120 = vunpack.c.h.b16 %v2096
        %v2121 = vpack.c.b16 %v2105, %v2105
        %v2122 = vpack.c.b16 %v2106, %v2106
        %v2123 = vpack.c.b16 %v2107, %v2107
        %v2124 = vpack.c.b16 %v2108, %v2108
        %v2125 = vpack.c.b16 %v2109, %v2109
        %v2126 = vpack.c.b16 %v2110, %v2110
        %v2127 = vpack.c.b16 %v2111, %v2111
        %v2128 = vpack.c.b16 %v2112, %v2112
        %v2129 = vpack.c.b16 %v2113, %v2113
        %v2130 = vpack.c.b16 %v2114, %v2114
        %v2131 = vpack.c.b16 %v2115, %v2115
        %v2132 = vpack.c.b16 %v2116, %v2116
        %v2133 = vpack.c.b16 %v2117, %v2117
        %v2134 = vpack.c.b16 %v2118, %v2118
        %v2135 = vpack.c.b16 %v2119, %v2119
        %v2136 = vpack.c.b16 %v2120, %v2120
        %2153 = vst [vmem:[%s335] sm:$0xf] %v2121
        %2154 = vst [vmem:[%s335 + $0x4] sm:$0xf] %v2122
        %2155 = vst [vmem:[%s335 + $0x8] sm:$0xf] %v2123
        %2156 = vst [vmem:[%s335 + $0xc] sm:$0xf] %v2124
        %2157 = vst [vmem:[%s335 + $0x10] sm:$0xf] %v2125
        %2158 = vst [vmem:[%s335 + $0x14] sm:$0xf] %v2126
        %2159 = vst [vmem:[%s335 + $0x18] sm:$0xf] %v2127
        %2160 = vst [vmem:[%s335 + $0x1c] sm:$0xf] %v2128
        %2161 = vst [vmem:[%s335 + $0x20] sm:$0xf] %v2129
        %2162 = vst [vmem:[%s335 + $0x24] sm:$0xf] %v2130
        %2163 = vst [vmem:[%s335 + $0x28] sm:$0xf] %v2131
        %2164 = vst [vmem:[%s335 + $0x2c] sm:$0xf] %v2132
        %2165 = vst [vmem:[%s335 + $0x30] sm:$0xf] %v2133
        %2166 = vst [vmem:[%s335 + $0x34] sm:$0xf] %v2134
        %2167 = vst [vmem:[%s335 + $0x38] sm:$0xf] %v2135
        %2168 = vst [vmem:[%s335 + $0x3c] sm:$0xf] %v2136
        %s2169 = sand.u32 %s147, 1
        %s2170 = scalar_lea.sflag [#allocation4], %s2169
        %s2171 = sand.u32 %s147, 1
        %s2172 = smul.addr %s2171, 128
        %s2173 = scalar_lea.vmem [#allocation11], %s2172
        %s2174 = sand.u32 %s173, 1
        %s2175 = scalar_lea.sflag [#allocation13], %s2174
        %s2176 = sand.u32 %s173, 1
        %s2177 = smul.addr %s2176, 64
        %s2178 = scalar_lea.vmem [#allocation12], %s2177
        // Predicated region
        $region61: #{tpu_custom_call.1} parent=39 // pred_check
          %p2179 = pneg %p157
        $region62: #{tpu_custom_call.1} parent=39 // pred_check_branch
          %2181 = sbr.rel (%p2179) target = $region64
        $region63: #{tpu_custom_call.1} parent=39 // pred_region
          %s2182 = smul.u32 16, %s29
          %s2184 = ssub.s32 2048, 2048
          %2185 = vsyncadd %s2170, %s2184
          %s2186 = smul.addr %s2182, 128
          %s2187 = scalar_lea.hbm %s5, %s2186
          %s2188 = sshll.u32 %s2173, 4
          %s2189 = int_to_ptr.vmem [resolvable:$true] %s2188
          %2194 = dma.vmem_to_hbm [thread:$0]  %s2189, 2048, %s2187, %s2170, 128, 128, 8
        $region64: #{tpu_custom_call.1} parent=39 // pred_fallthru
          _
        // Predicated region
        $region65: #{tpu_custom_call.1} parent=39 // pred_check
          %p2195 = pneg %p183
        $region66: #{tpu_custom_call.1} parent=39 // pred_check_branch
          %2197 = sbr.rel (%p2195) target = $region68
        $region67: #{tpu_custom_call.1} parent=39 // pred_region
          %s2198 = smul.u32 16, %s29
          %s2200 = ssub.s32 1024, 1024
          %2201 = vsyncadd %s2175, %s2200
          %s2202 = smul.addr %s2198, 64
          %s2203 = scalar_lea.hbm %s6, %s2202
          %s2204 = sshll.u32 %s2178, 4
          %s2205 = int_to_ptr.vmem [resolvable:$true] %s2204
          %2210 = dma.vmem_to_hbm [thread:$0]  %s2205, 1024, %s2203, %s2175, 64, 64, 4
        $region68: #{tpu_custom_call.1} parent=39 // pred_fallthru
          _
      $region40: #{tpu_custom_call.1} parent=5 // pred_fallthru
        _
      %p2211 = scmp.le.s32.totalorder 2, %s24
      // Predicated region
      $region69: #{tpu_custom_call.1} parent=5 // pred_check
        %p2212 = pneg %p2211
      $region70: #{tpu_custom_call.1} parent=5 // pred_check_branch
        %2214 = sbr.rel (%p2212) target = $region72
      $region71: #{tpu_custom_call.1} parent=5 // pred_region
        %s2215 = ssub.s32 %s24, 2
        // Predicated region
        $region73: #{tpu_custom_call.1} parent=71 // pred_check
          %p2216 = pneg %p163
        $region74: #{tpu_custom_call.1} parent=71 // pred_check_branch
          %2218 = sbr.rel (%p2216) target = $region76
        $region75: #{tpu_custom_call.1} parent=71 // pred_region
          %s2219 = sand.u32 %s148, 1
          %s2220 = scalar_lea.sflag [#allocation4], %s2219
          %s2221 = sand.u32 %s148, 1
          %s2222 = smul.addr %s2221, 128
          %s2223 = scalar_lea.vmem [#allocation11], %s2222
          %2224 = dma.done %s2220, 2048
        $region76: #{tpu_custom_call.1} parent=71 // pred_fallthru
          _
        // Predicated region
        $region77: #{tpu_custom_call.1} parent=71 // pred_check
          %p2225 = pneg %p189
        $region78: #{tpu_custom_call.1} parent=71 // pred_check_branch
          %2227 = sbr.rel (%p2225) target = $region80
        $region79: #{tpu_custom_call.1} parent=71 // pred_region
          %s2228 = sand.u32 %s174, 1
          %s2229 = scalar_lea.sflag [#allocation13], %s2228
          %s2230 = sand.u32 %s174, 1
          %s2231 = smul.addr %s2230, 64
          %s2232 = scalar_lea.vmem [#allocation12], %s2231
          %2233 = dma.done %s2229, 1024
        $region80: #{tpu_custom_call.1} parent=71 // pred_fallthru
          _
      $region72: #{tpu_custom_call.1} parent=5 // pred_fallthru
        _
    $region6: #{tpu_custom_call.1} parent=1 // loop_footer
      %s28 = sadd.s32 1, %s24
    $region7: #{tpu_custom_call.1} parent=1 // loop_footer_branch
      %23 = sbr.rel target = $region3
    $region8: #{tpu_custom_call.1} parent=1 // loop_exit
      _
    %2234 = vsyncpa [#allocation3], 1
    %s2235 = scalar_lea.sflag [#allocation3], 1
    %2236 = vsyncpa %s2235, 1
    %2237 = vsyncpa [#allocation6], 1
    %2238 = vsyncpa [#allocation9], 1
    %2239 = vsyncpa [#allocation4], 1
    %s2240 = scalar_lea.sflag [#allocation4], 1
    %2241 = vsyncpa %s2240, 1
    %2242 = vsyncpa [#allocation13], 1
    %s2243 = scalar_lea.sflag [#allocation13], 1
    %2244 = vsyncpa %s2243, 1

</llo_original>
